<compile_context>
chip_gen: v7x
topology: tpu7x:2x2x1
jax: 0.10.0
libtpu: 0.0.40
codegen_flags: <defaults>
</compile_context>

<pallas_src>
import math

import jax
import jax.numpy as jnp
from jax.experimental import pallas as pl
from jax.experimental.pallas import tpu as pltpu


def bigru_fused_kernel(xp_ref, m_ref, wih_ref, bgi_ref, whh_ref, bhn_ref,
                       out_ref, hfin_ref, gi_ref):
    """Fused bidirectional GRU; whole (small) sequence resident in VMEM.

    Column layout of every 6H-wide object is gate-major, direction-interleaved:
        [r_f | r_b | z_f | z_b | n_f | n_b]
    and every 2H-wide object is [fwd | bwd].

    xp_ref  : [T*Bp, 2D]  row block i = [x(t=i) | x(t=T-1-i)]  (fwd / reversed bwd)
    m_ref   : [T*Bp, 2H]  validity masks, row block i = [m(i)*H | m(T-1-i)*H]
    wih_ref : [2D, 6H]    block-diagonal input projection (both directions)
    bgi_ref : [1, 6H]     b_ih with the r/z slices of b_hh folded in (n: b_in only)
    whh_ref : [2H, 6H]    block-diagonal hidden projection (both directions)
    bhn_ref : [1, 2H]     b_hn per direction (multiplied by r, so kept separate)
    out_ref : [T*Bp, 2H]  row block i = [h_f(i) | h_b(T-1-i)] (zeroed on padding)
    hfin_ref: [Bp, 2H]    final hidden states [h_fwd | h_bwd]
    gi_ref  : [T*Bp, 6H]  VMEM scratch for the hoisted input projection

    PyTorch GRU gate math: n = tanh(W_in x + b_in + r * (W_hn h + b_hn)),
    h' = (1 - z) * n + z * h.
    """
    Bp, H2 = hfin_ref.shape
    H = H2 // 2
    T = out_ref.shape[0] // Bp
    H4, H6 = 4 * H, 6 * H

    # ---- hoisted input projection: ONE MXU matmul covers both directions and
    #      every timestep, biases folded; parked in a VMEM scratch so the loop
    #      below only keeps one step's [Bp, 6H] slice live. ----
    gi_ref[...] = (jnp.dot(xp_ref[...], wih_ref[...],
                           preferred_element_type=jnp.float32)
                   + bgi_ref[...])

    whh = whh_ref[...]                                     # [2H, 6H] block-diag
    bhn = jnp.broadcast_to(bhn_ref[...], (Bp, H2))         # hoisted broadcast

    h = jnp.zeros((Bp, H2), jnp.float32)                   # [h_fwd | h_bwd]
    outs = []

    # Statically unrolled recurrence (T is a toy compile-time constant here):
    # iteration i advances the forward chain at t=i and the backward chain at
    # t=T-1-i, both through the SAME fused block-diagonal matmul.
    for i in range(T):
        r0 = i * Bp                                        # sublane-aligned offset
        gi_t = gi_ref[r0:r0 + Bp, :]                       # [Bp, 6H]
        m_t = m_ref[r0:r0 + Bp, :] != 0.0                  # [Bp, 2H] bool

        # only matmul on the serial critical path (both directions at once)
        gh = jnp.dot(h.astype(whh.dtype), whh,
                     preferred_element_type=jnp.float32)   # [Bp, 6H]

        rz = jax.nn.sigmoid(gi_t[:, 0:H4] + gh[:, 0:H4])   # fused r/z, both dirs
        r, z = rz[:, 0:H2], rz[:, H2:H4]
        n = jnp.tanh(gi_t[:, H4:H6] + r * (gh[:, H4:H6] + bhn))
        h_new = n + z * (h - n)                            # == (1-z)*n + z*h

        # pack_padded_sequence semantics: freeze h past the true length,
        # zero the padded outputs (one select each).
        h = jnp.where(m_t, h_new, h)
        outs.append(jnp.where(m_t, h, 0.0))

    # single lane-dense store after the loop (no per-step masked partial stores)
    out_ref[...] = jnp.concatenate(outs, axis=0)
    hfin_ref[...] = h


def init_encoder_params(key, input_size, hidden_size):
    """Deterministic PyTorch-style GRU init: U(-1/sqrt(H), 1/sqrt(H))."""
    H, D = hidden_size, input_size
    bound = 1.0 / math.sqrt(H)
    names = ["w_ih_f", "w_hh_f", "b_ih_f", "b_hh_f",
             "w_ih_b", "w_hh_b", "b_ih_b", "b_hh_b"]
    shapes = [(3 * H, D), (3 * H, H), (3 * H,), (3 * H,),
              (3 * H, D), (3 * H, H), (3 * H,), (3 * H,)]
    keys = jax.random.split(key, len(names))
    return {n: jax.random.uniform(k, s, jnp.float32, -bound, bound)
            for n, s, k in zip(names, shapes, keys)}


def _pack_weights(params, H, D):
    """Gate-major, direction-block-diagonal weight packing (pure-JAX glue)."""
    H2 = 2 * H
    wti_f = params["w_ih_f"].T    # [D, 3H], cols [r|z|n]
    wti_b = params["w_ih_b"].T
    wth_f = params["w_hh_f"].T    # [H, 3H]
    wth_b = params["w_hh_b"].T

    wih = jnp.zeros((2 * D, 6 * H), jnp.float32)
    whh = jnp.zeros((H2, 6 * H), jnp.float32)
    for g in range(3):                                 # gate-major: r, z, n
        cf, cb = 2 * g * H, (2 * g + 1) * H
        src = slice(g * H, (g + 1) * H)
        wih = wih.at[0:D, cf:cf + H].set(wti_f[:, src])
        wih = wih.at[D:2 * D, cb:cb + H].set(wti_b[:, src])
        whh = whh.at[0:H, cf:cf + H].set(wth_f[:, src])
        whh = whh.at[H:H2, cb:cb + H].set(wth_b[:, src])

    bih_f, bhh_f = params["b_ih_f"], params["b_hh_f"]
    bih_b, bhh_b = params["b_ih_b"], params["b_hh_b"]

    def fold(bih, bhh, g):      # r/z gates: b_ih + b_hh folds into gi
        return bih[g * H:(g + 1) * H] + bhh[g * H:(g + 1) * H]

    bgi = jnp.concatenate([
        fold(bih_f, bhh_f, 0), fold(bih_b, bhh_b, 0),    # r_f | r_b
        fold(bih_f, bhh_f, 1), fold(bih_b, bhh_b, 1),    # z_f | z_b
        bih_f[2 * H:], bih_b[2 * H:],                    # n_f | n_b  (b_in only)
    ])[None, :]                                          # [1, 6H]
    bhn = jnp.concatenate([bhh_f[2 * H:], bhh_b[2 * H:]])[None, :]   # [1, 2H]
    return wih, whh, bgi, bhn


def encoder_forward(params, x, lengths, compute_dtype=jnp.float32):
    """Matches Encoder.forward: x [B, T, D] (batch_first), lengths [B].

    Returns (output [B, T, 2H], final [1, B, 2H]).
    `compute_dtype=jnp.bfloat16` casts the matmul inputs (f32 accumulation) —
    the production choice for the v6e/v7x MXU.
    """
    B, T, D = x.shape
    H = params["w_hh_f"].shape[1]
    H2 = 2 * H
    Bp = ((B + 7) // 8) * 8      # pad batch to sublane granularity (>=128 in prod)

    # ---- glue: pad batch, build time-major fwd / time-reversed bwd input pairs
    #      and the matching full-width validity masks. ----
    x_pad = jnp.zeros((Bp, T, D), jnp.float32).at[:B].set(x.astype(jnp.float32))
    len_pad = jnp.zeros((Bp,), jnp.int32).at[:B].set(lengths.astype(jnp.int32))

    valid = (jnp.arange(T)[None, :] < len_pad[:, None]).astype(jnp.float32)  # [Bp,T]
    m_fwd = valid.T                        # [T, Bp]
    m_bwd = m_fwd[::-1]                    # bwd chain runs t = T-1 .. 0

    x_tbd = jnp.transpose(x_pad, (1, 0, 2))          # [T, Bp, D]
    x_rev = x_tbd[::-1]
    xp = jnp.concatenate([x_tbd, x_rev], axis=2).reshape(T * Bp, 2 * D)
    xp = xp.astype(compute_dtype)

    m_full = jnp.concatenate(
        [jnp.broadcast_to(m_fwd[:, :, None], (T, Bp, H)),
         jnp.broadcast_to(m_bwd[:, :, None], (T, Bp, H))],
        axis=2).reshape(T * Bp, H2)

    wih, whh, bgi, bhn = _pack_weights(params, H, D)
    wih = wih.astype(compute_dtype)
    whh = whh.astype(compute_dtype)

    args = (xp, m_full, wih, bgi, whh, bhn)
    out_shapes = (
        jax.ShapeDtypeStruct((T * Bp, H2), jnp.float32),   # per-step outputs
        jax.ShapeDtypeStruct((Bp, H2), jnp.float32),       # final hidden [fwd|bwd]
    )

    # explicit VMEM budget, now including the gi scratch (largest resident buffer)
    isz = jnp.dtype(compute_dtype).itemsize
    n_bytes = (T * Bp * 2 * D * isz          # xp
               + T * Bp * H2 * 4             # mask
               + 2 * D * 6 * H * isz         # wih
               + H2 * 6 * H * isz            # whh
               + 8 * H * 4                   # biases
               + T * Bp * 6 * H * 4          # gi scratch
               + T * Bp * H2 * 4             # out
               + Bp * H2 * 4)                # hfin
    vmem_limit = int(max(2 * n_bytes + (4 << 20), 16 << 20))

    vmem = lambda: pl.BlockSpec(memory_space=pltpu.MemorySpace.VMEM)
    out_flat, hfin = pl.pallas_call(
        bigru_fused_kernel,
        out_shape=out_shapes,
        in_specs=[vmem() for _ in args],
        out_specs=tuple(vmem() for _ in out_shapes),
        scratch_shapes=[pltpu.VMEM((T * Bp, 6 * H), jnp.float32)],
        compiler_params=pltpu.CompilerParams(vmem_limit_bytes=vmem_limit),
    )(*args)

    # glue: un-reverse the backward half, drop batch padding, back to batch-first
    out3 = out_flat.reshape(T, Bp, H2)
    out_f = out3[:, :B, 0:H]                  # fwd output at time t
    out_b = out3[::-1, :B, H:H2]              # bwd output at time t
    output = jnp.concatenate([out_f, out_b], axis=-1).transpose(1, 0, 2)  # [B,T,2H]
    final = hfin[None, :B, :]                                             # [1,B,2H]
    return output, final


def _reference_forward(params, x, lengths):
    """Pure-JAX reference (lax.scan) for correctness checking."""
    B, T, D = x.shape
    H = params["w_hh_f"].shape[1]
    valid = (jnp.arange(T)[None, :] < lengths[:, None]).astype(jnp.float32)
    x_tbd = jnp.transpose(x, (1, 0, 2)).astype(jnp.float32)
    m_tb1 = jnp.transpose(valid, (1, 0))[:, :, None]

    def run_dir(wih, whh, bih, bhh, reverse):
        wih_T, whh_T = wih.T, whh.T

        def step(h, inputs):
            x_t, m_t = inputs
            gi = x_t @ wih_T + bih[None, :]
            gh = h @ whh_T + bhh[None, :]
            r = jax.nn.sigmoid(gi[:, :H] + gh[:, :H])
            z = jax.nn.sigmoid(gi[:, H:2 * H] + gh[:, H:2 * H])
            n = jnp.tanh(gi[:, 2 * H:] + r * gh[:, 2 * H:])
            h_new = (1.0 - z) * n + z * h
            h = m_t * h_new + (1.0 - m_t) * h
            return h, h * m_t

        h0 = jnp.zeros((B, H), jnp.float32)
        h_fin, outs = jax.lax.scan(step, h0, (x_tbd, m_tb1), reverse=reverse)
        return outs, h_fin

    out_f, hf = run_dir(params["w_ih_f"], params["w_hh_f"],
                        params["b_ih_f"], params["b_hh_f"], reverse=False)
    out_b, hb = run_dir(params["w_ih_b"], params["w_hh_b"],
                        params["b_ih_b"], params["b_hh_b"], reverse=True)
    output = jnp.concatenate([out_f, out_b], axis=-1).transpose(1, 0, 2)
    final = jnp.concatenate([hf, hb], axis=-1)[None, :, :]
    return output, final


if __name__ == "__main__":
    B, T, D, H = 2, 8, 16, 32

    key = jax.random.PRNGKey(0)
    k_param, k_x = jax.random.split(key)
    params = init_encoder_params(k_param, input_size=D, hidden_size=H)

    x = jax.random.normal(k_x, (B, T, D), dtype=jnp.float32)      # [batch, time, dim]
    lengths = jnp.array([T, T - 3], dtype=jnp.int32)              # sorted descending

    ref_out, ref_final = _reference_forward(params, x, lengths)

    # f32 matmul path: strict numerics check against the pure-JAX reference.
    output, final = encoder_forward(params, x, lengths, compute_dtype=jnp.float32)
    output = jax.block_until_ready(output)
    final = jax.block_until_ready(final)
    assert output.shape == (B, T, 2 * H)
    assert final.shape == (1, B, 2 * H)
    assert jnp.allclose(output, ref_out, rtol=1e-4, atol=1e-4)
    assert jnp.allclose(final, ref_final, rtol=1e-4, atol=1e-4)

    # bf16 matmul path (v6e/v7x MXU config, f32 accumulation): loose tolerance.
    output_bf, final_bf = encoder_forward(params, x, lengths,
                                          compute_dtype=jnp.bfloat16)
    output_bf = jax.block_until_ready(output_bf)
    final_bf = jax.block_until_ready(final_bf)
    assert jnp.allclose(output_bf, ref_out, rtol=5e-2, atol=5e-2)
    assert jnp.allclose(final_bf, ref_final, rtol=5e-2, atol=5e-2)

    print("KERNEL_OK")
</pallas_src>

<mosaic_0001>
module attributes {stable_mosaic.version = 11 : i64} {
  func.func @bigru_fused_kernel(%arg0: memref<64x32xf32, #tpu.memory_space<vmem>>, %arg1: memref<64x64xf32, #tpu.memory_space<vmem>>, %arg2: memref<32x192xf32, #tpu.memory_space<vmem>>, %arg3: memref<1x192xf32, #tpu.memory_space<vmem>>, %arg4: memref<64x192xf32, #tpu.memory_space<vmem>>, %arg5: memref<1x64xf32, #tpu.memory_space<vmem>>, %arg6: memref<64x64xf32, #tpu.memory_space<vmem>>, %arg7: memref<8x64xf32, #tpu.memory_space<vmem>>, %arg8: memref<64x192xf32, #tpu.memory_space<vmem>>) attributes {dimension_semantics = [], scalar_prefetch = 0 : i64, scratch_operands = 1 : i64, tpu.core_type = #tpu.core_type<tc>} {
    %c0 = arith.constant 0 : index
    %c0_0 = arith.constant 0 : index
    %0 = vector.load %arg0[%c0, %c0_0] : memref<64x32xf32, #tpu.memory_space<vmem>>, vector<64x32xf32>
    %c0_1 = arith.constant 0 : index
    %c0_2 = arith.constant 0 : index
    %1 = vector.load %arg2[%c0_1, %c0_2] : memref<32x192xf32, #tpu.memory_space<vmem>>, vector<32x192xf32>
    %cst = arith.constant dense<0.000000e+00> : vector<64x192xf32>
    %2 = tpu.matmul %0, %1, %cst {dimension_numbers = #tpu.dot_dimension_numbers<[1], [0], [0], [1], [0, 0, 1, 1], [], []>} : vector<64x32xf32>, vector<32x192xf32>, vector<64x192xf32> -> vector<64x192xf32>
    %c0_3 = arith.constant 0 : index
    %c0_4 = arith.constant 0 : index
    %3 = vector.load %arg3[%c0_3, %c0_4] : memref<1x192xf32, #tpu.memory_space<vmem>>, vector<1x192xf32>
    %4 = vector.broadcast %3 : vector<1x192xf32> to vector<64x192xf32>
    %5 = arith.addf %2, %4 : vector<64x192xf32>
    %c0_5 = arith.constant 0 : index
    %c0_6 = arith.constant 0 : index
    %6 = vector.load %arg8[%c0_5, %c0_6] : memref<64x192xf32, #tpu.memory_space<vmem>>, vector<64x192xf32>
    tpu.vector_store %arg8[%c0_5, %c0_6], %5 {strides = array<i32>} : memref<64x192xf32, #tpu.memory_space<vmem>>, vector<64x192xf32>,
    %c0_7 = arith.constant 0 : index
    %c0_8 = arith.constant 0 : index
    %7 = vector.load %arg4[%c0_7, %c0_8] : memref<64x192xf32, #tpu.memory_space<vmem>>, vector<64x192xf32>
    %c0_9 = arith.constant 0 : index
    %c0_10 = arith.constant 0 : index
    %8 = vector.load %arg5[%c0_9, %c0_10] : memref<1x64xf32, #tpu.memory_space<vmem>>, vector<1x64xf32>
    %9 = vector.shape_cast %8 : vector<1x64xf32> to vector<1x64xf32>
    %10 = vector.broadcast %9 : vector<1x64xf32> to vector<8x64xf32>
    %cst_11 = arith.constant 0.000000e+00 : f32
    %11 = vector.broadcast %cst_11 : f32 to vector<8x64xf32>
    %c0_12 = arith.constant 0 : index
    %c0_13 = arith.constant 0 : index
    %12 = vector.load %arg8[%c0_12, %c0_13] : memref<64x192xf32, #tpu.memory_space<vmem>>, vector<8x192xf32>
    %c0_14 = arith.constant 0 : index
    %c0_15 = arith.constant 0 : index
    %13 = vector.load %arg1[%c0_14, %c0_15] : memref<64x64xf32, #tpu.memory_space<vmem>>, vector<8x64xf32>
    %cst_16 = arith.constant 0.000000e+00 : f32
    %14 = vector.broadcast %cst_16 : f32 to vector<8x64xf32>
    %15 = arith.cmpf one, %13, %14 : vector<8x64xf32>
    %cst_17 = arith.constant dense<0.000000e+00> : vector<8x192xf32>
    %16 = tpu.matmul %11, %7, %cst_17 {dimension_numbers = #tpu.dot_dimension_numbers<[1], [0], [0], [1], [0, 0, 1, 1], [], []>} : vector<8x64xf32>, vector<64x192xf32>, vector<8x192xf32> -> vector<8x192xf32>
    %17 = vector.extract_strided_slice %12 {offsets = [0, 0], sizes = [8, 128], strides = [1, 1]} : vector<8x192xf32> to vector<8x128xf32>
    %18 = vector.extract_strided_slice %16 {offsets = [0, 0], sizes = [8, 128], strides = [1, 1]} : vector<8x192xf32> to vector<8x128xf32>
    %19 = arith.addf %17, %18 : vector<8x128xf32>
    %20 = arith.negf %19 : vector<8x128xf32>
    %21 = math.exp %20 : vector<8x128xf32>
    %cst_18 = arith.constant 1.000000e+00 : f32
    %22 = vector.broadcast %cst_18 : f32 to vector<8x128xf32>
    %23 = arith.addf %22, %21 : vector<8x128xf32>
    %24 = arith.divf %22, %23 : vector<8x128xf32>
    %25 = vector.extract_strided_slice %24 {offsets = [0, 0], sizes = [8, 64], strides = [1, 1]} : vector<8x128xf32> to vector<8x64xf32>
    %26 = vector.extract_strided_slice %24 {offsets = [0, 64], sizes = [8, 64], strides = [1, 1]} : vector<8x128xf32> to vector<8x64xf32>
    %27 = vector.extract_strided_slice %12 {offsets = [0, 128], sizes = [8, 64], strides = [1, 1]} : vector<8x192xf32> to vector<8x64xf32>
    %28 = vector.extract_strided_slice %16 {offsets = [0, 128], sizes = [8, 64], strides = [1, 1]} : vector<8x192xf32> to vector<8x64xf32>
    %29 = arith.addf %28, %10 : vector<8x64xf32>
    %30 = arith.mulf %25, %29 : vector<8x64xf32>
    %31 = arith.addf %27, %30 : vector<8x64xf32>
    %32 = math.tanh %31 : vector<8x64xf32>
    %33 = arith.subf %11, %32 : vector<8x64xf32>
    %34 = arith.mulf %26, %33 : vector<8x64xf32>
    %35 = arith.addf %32, %34 : vector<8x64xf32>
    %36 = arith.select %15, %35, %11 : vector<8x64xi1>, vector<8x64xf32>
    %cst_19 = arith.constant 0.000000e+00 : f32
    %37 = vector.broadcast %cst_19 : f32 to vector<8x64xf32>
    %38 = arith.select %15, %36, %37 : vector<8x64xi1>, vector<8x64xf32>
    %c8 = arith.constant 8 : index
    %c0_20 = arith.constant 0 : index
    %39 = vector.load %arg8[%c8, %c0_20] : memref<64x192xf32, #tpu.memory_space<vmem>>, vector<8x192xf32>
    %c8_21 = arith.constant 8 : index
    %c0_22 = arith.constant 0 : index
    %40 = vector.load %arg1[%c8_21, %c0_22] : memref<64x64xf32, #tpu.memory_space<vmem>>, vector<8x64xf32>
    %cst_23 = arith.constant 0.000000e+00 : f32
    %41 = vector.broadcast %cst_23 : f32 to vector<8x64xf32>
    %42 = arith.cmpf one, %40, %41 : vector<8x64xf32>
    %cst_24 = arith.constant dense<0.000000e+00> : vector<8x192xf32>
    %43 = tpu.matmul %36, %7, %cst_24 {dimension_numbers = #tpu.dot_dimension_numbers<[1], [0], [0], [1], [0, 0, 1, 1], [], []>} : vector<8x64xf32>, vector<64x192xf32>, vector<8x192xf32> -> vector<8x192xf32>
    %44 = vector.extract_strided_slice %39 {offsets = [0, 0], sizes = [8, 128], strides = [1, 1]} : vector<8x192xf32> to vector<8x128xf32>
    %45 = vector.extract_strided_slice %43 {offsets = [0, 0], sizes = [8, 128], strides = [1, 1]} : vector<8x192xf32> to vector<8x128xf32>
    %46 = arith.addf %44, %45 : vector<8x128xf32>
    %47 = arith.negf %46 : vector<8x128xf32>
    %48 = math.exp %47 : vector<8x128xf32>
    %cst_25 = arith.constant 1.000000e+00 : f32
    %49 = vector.broadcast %cst_25 : f32 to vector<8x128xf32>
    %50 = arith.addf %49, %48 : vector<8x128xf32>
    %51 = arith.divf %49, %50 : vector<8x128xf32>
    %52 = vector.extract_strided_slice %51 {offsets = [0, 0], sizes = [8, 64], strides = [1, 1]} : vector<8x128xf32> to vector<8x64xf32>
    %53 = vector.extract_strided_slice %51 {offsets = [0, 64], sizes = [8, 64], strides = [1, 1]} : vector<8x128xf32> to vector<8x64xf32>
    %54 = vector.extract_strided_slice %39 {offsets = [0, 128], sizes = [8, 64], strides = [1, 1]} : vector<8x192xf32> to vector<8x64xf32>
    %55 = vector.extract_strided_slice %43 {offsets = [0, 128], sizes = [8, 64], strides = [1, 1]} : vector<8x192xf32> to vector<8x64xf32>
    %56 = arith.addf %55, %10 : vector<8x64xf32>
    %57 = arith.mulf %52, %56 : vector<8x64xf32>
    %58 = arith.addf %54, %57 : vector<8x64xf32>
    %59 = math.tanh %58 : vector<8x64xf32>
    %60 = arith.subf %36, %59 : vector<8x64xf32>
    %61 = arith.mulf %53, %60 : vector<8x64xf32>
    %62 = arith.addf %59, %61 : vector<8x64xf32>
    %63 = arith.select %42, %62, %36 : vector<8x64xi1>, vector<8x64xf32>
    %cst_26 = arith.constant 0.000000e+00 : f32
    %64 = vector.broadcast %cst_26 : f32 to vector<8x64xf32>
    %65 = arith.select %42, %63, %64 : vector<8x64xi1>, vector<8x64xf32>
    %c16 = arith.constant 16 : index
    %c0_27 = arith.constant 0 : index
    %66 = vector.load %arg8[%c16, %c0_27] : memref<64x192xf32, #tpu.memory_space<vmem>>, vector<8x192xf32>
    %c16_28 = arith.constant 16 : index
    %c0_29 = arith.constant 0 : index
    %67 = vector.load %arg1[%c16_28, %c0_29] : memref<64x64xf32, #tpu.memory_space<vmem>>, vector<8x64xf32>
    %cst_30 = arith.constant 0.000000e+00 : f32
    %68 = vector.broadcast %cst_30 : f32 to vector<8x64xf32>
    %69 = arith.cmpf one, %67, %68 : vector<8x64xf32>
    %cst_31 = arith.constant dense<0.000000e+00> : vector<8x192xf32>
    %70 = tpu.matmul %63, %7, %cst_31 {dimension_numbers = #tpu.dot_dimension_numbers<[1], [0], [0], [1], [0, 0, 1, 1], [], []>} : vector<8x64xf32>, vector<64x192xf32>, vector<8x192xf32> -> vector<8x192xf32>
    %71 = vector.extract_strided_slice %66 {offsets = [0, 0], sizes = [8, 128], strides = [1, 1]} : vector<8x192xf32> to vector<8x128xf32>
    %72 = vector.extract_strided_slice %70 {offsets = [0, 0], sizes = [8, 128], strides = [1, 1]} : vector<8x192xf32> to vector<8x128xf32>
    %73 = arith.addf %71, %72 : vector<8x128xf32>
    %74 = arith.negf %73 : vector<8x128xf32>
    %75 = math.exp %74 : vector<8x128xf32>
    %cst_32 = arith.constant 1.000000e+00 : f32
    %76 = vector.broadcast %cst_32 : f32 to vector<8x128xf32>
    %77 = arith.addf %76, %75 : vector<8x128xf32>
    %78 = arith.divf %76, %77 : vector<8x128xf32>
    %79 = vector.extract_strided_slice %78 {offsets = [0, 0], sizes = [8, 64], strides = [1, 1]} : vector<8x128xf32> to vector<8x64xf32>
    %80 = vector.extract_strided_slice %78 {offsets = [0, 64], sizes = [8, 64], strides = [1, 1]} : vector<8x128xf32> to vector<8x64xf32>
    %81 = vector.extract_strided_slice %66 {offsets = [0, 128], sizes = [8, 64], strides = [1, 1]} : vector<8x192xf32> to vector<8x64xf32>
    %82 = vector.extract_strided_slice %70 {offsets = [0, 128], sizes = [8, 64], strides = [1, 1]} : vector<8x192xf32> to vector<8x64xf32>
    %83 = arith.addf %82, %10 : vector<8x64xf32>
    %84 = arith.mulf %79, %83 : vector<8x64xf32>
    %85 = arith.addf %81, %84 : vector<8x64xf32>
    %86 = math.tanh %85 : vector<8x64xf32>
    %87 = arith.subf %63, %86 : vector<8x64xf32>
    %88 = arith.mulf %80, %87 : vector<8x64xf32>
    %89 = arith.addf %86, %88 : vector<8x64xf32>
    %90 = arith.select %69, %89, %63 : vector<8x64xi1>, vector<8x64xf32>
    %cst_33 = arith.constant 0.000000e+00 : f32
    %91 = vector.broadcast %cst_33 : f32 to vector<8x64xf32>
    %92 = arith.select %69, %90, %91 : vector<8x64xi1>, vector<8x64xf32>
    %c24 = arith.constant 24 : index
    %c0_34 = arith.constant 0 : index
    %93 = vector.load %arg8[%c24, %c0_34] : memref<64x192xf32, #tpu.memory_space<vmem>>, vector<8x192xf32>
    %c24_35 = arith.constant 24 : index
    %c0_36 = arith.constant 0 : index
    %94 = vector.load %arg1[%c24_35, %c0_36] : memref<64x64xf32, #tpu.memory_space<vmem>>, vector<8x64xf32>
    %cst_37 = arith.constant 0.000000e+00 : f32
    %95 = vector.broadcast %cst_37 : f32 to vector<8x64xf32>
    %96 = arith.cmpf one, %94, %95 : vector<8x64xf32>
    %cst_38 = arith.constant dense<0.000000e+00> : vector<8x192xf32>
    %97 = tpu.matmul %90, %7, %cst_38 {dimension_numbers = #tpu.dot_dimension_numbers<[1], [0], [0], [1], [0, 0, 1, 1], [], []>} : vector<8x64xf32>, vector<64x192xf32>, vector<8x192xf32> -> vector<8x192xf32>
    %98 = vector.extract_strided_slice %93 {offsets = [0, 0], sizes = [8, 128], strides = [1, 1]} : vector<8x192xf32> to vector<8x128xf32>
    %99 = vector.extract_strided_slice %97 {offsets = [0, 0], sizes = [8, 128], strides = [1, 1]} : vector<8x192xf32> to vector<8x128xf32>
    %100 = arith.addf %98, %99 : vector<8x128xf32>
    %101 = arith.negf %100 : vector<8x128xf32>
    %102 = math.exp %101 : vector<8x128xf32>
    %cst_39 = arith.constant 1.000000e+00 : f32
    %103 = vector.broadcast %cst_39 : f32 to vector<8x128xf32>
    %104 = arith.addf %103, %102 : vector<8x128xf32>
    %105 = arith.divf %103, %104 : vector<8x128xf32>
    %106 = vector.extract_strided_slice %105 {offsets = [0, 0], sizes = [8, 64], strides = [1, 1]} : vector<8x128xf32> to vector<8x64xf32>
    %107 = vector.extract_strided_slice %105 {offsets = [0, 64], sizes = [8, 64], strides = [1, 1]} : vector<8x128xf32> to vector<8x64xf32>
    %108 = vector.extract_strided_slice %93 {offsets = [0, 128], sizes = [8, 64], strides = [1, 1]} : vector<8x192xf32> to vector<8x64xf32>
    %109 = vector.extract_strided_slice %97 {offsets = [0, 128], sizes = [8, 64], strides = [1, 1]} : vector<8x192xf32> to vector<8x64xf32>
    %110 = arith.addf %109, %10 : vector<8x64xf32>
    %111 = arith.mulf %106, %110 : vector<8x64xf32>
    %112 = arith.addf %108, %111 : vector<8x64xf32>
    %113 = math.tanh %112 : vector<8x64xf32>
    %114 = arith.subf %90, %113 : vector<8x64xf32>
    %115 = arith.mulf %107, %114 : vector<8x64xf32>
    %116 = arith.addf %113, %115 : vector<8x64xf32>
    %117 = arith.select %96, %116, %90 : vector<8x64xi1>, vector<8x64xf32>
    %cst_40 = arith.constant 0.000000e+00 : f32
    %118 = vector.broadcast %cst_40 : f32 to vector<8x64xf32>
    %119 = arith.select %96, %117, %118 : vector<8x64xi1>, vector<8x64xf32>
    %c32 = arith.constant 32 : index
    %c0_41 = arith.constant 0 : index
    %120 = vector.load %arg8[%c32, %c0_41] : memref<64x192xf32, #tpu.memory_space<vmem>>, vector<8x192xf32>
    %c32_42 = arith.constant 32 : index
    %c0_43 = arith.constant 0 : index
    %121 = vector.load %arg1[%c32_42, %c0_43] : memref<64x64xf32, #tpu.memory_space<vmem>>, vector<8x64xf32>
    %cst_44 = arith.constant 0.000000e+00 : f32
    %122 = vector.broadcast %cst_44 : f32 to vector<8x64xf32>
    %123 = arith.cmpf one, %121, %122 : vector<8x64xf32>
    %cst_45 = arith.constant dense<0.000000e+00> : vector<8x192xf32>
    %124 = tpu.matmul %117, %7, %cst_45 {dimension_numbers = #tpu.dot_dimension_numbers<[1], [0], [0], [1], [0, 0, 1, 1], [], []>} : vector<8x64xf32>, vector<64x192xf32>, vector<8x192xf32> -> vector<8x192xf32>
    %125 = vector.extract_strided_slice %120 {offsets = [0, 0], sizes = [8, 128], strides = [1, 1]} : vector<8x192xf32> to vector<8x128xf32>
    %126 = vector.extract_strided_slice %124 {offsets = [0, 0], sizes = [8, 128], strides = [1, 1]} : vector<8x192xf32> to vector<8x128xf32>
    %127 = arith.addf %125, %126 : vector<8x128xf32>
    %128 = arith.negf %127 : vector<8x128xf32>
    %129 = math.exp %128 : vector<8x128xf32>
    %cst_46 = arith.constant 1.000000e+00 : f32
    %130 = vector.broadcast %cst_46 : f32 to vector<8x128xf32>
    %131 = arith.addf %130, %129 : vector<8x128xf32>
    %132 = arith.divf %130, %131 : vector<8x128xf32>
    %133 = vector.extract_strided_slice %132 {offsets = [0, 0], sizes = [8, 64], strides = [1, 1]} : vector<8x128xf32> to vector<8x64xf32>
    %134 = vector.extract_strided_slice %132 {offsets = [0, 64], sizes = [8, 64], strides = [1, 1]} : vector<8x128xf32> to vector<8x64xf32>
    %135 = vector.extract_strided_slice %120 {offsets = [0, 128], sizes = [8, 64], strides = [1, 1]} : vector<8x192xf32> to vector<8x64xf32>
    %136 = vector.extract_strided_slice %124 {offsets = [0, 128], sizes = [8, 64], strides = [1, 1]} : vector<8x192xf32> to vector<8x64xf32>
    %137 = arith.addf %136, %10 : vector<8x64xf32>
    %138 = arith.mulf %133, %137 : vector<8x64xf32>
    %139 = arith.addf %135, %138 : vector<8x64xf32>
    %140 = math.tanh %139 : vector<8x64xf32>
    %141 = arith.subf %117, %140 : vector<8x64xf32>
    %142 = arith.mulf %134, %141 : vector<8x64xf32>
    %143 = arith.addf %140, %142 : vector<8x64xf32>
    %144 = arith.select %123, %143, %117 : vector<8x64xi1>, vector<8x64xf32>
    %cst_47 = arith.constant 0.000000e+00 : f32
    %145 = vector.broadcast %cst_47 : f32 to vector<8x64xf32>
    %146 = arith.select %123, %144, %145 : vector<8x64xi1>, vector<8x64xf32>
    %c40 = arith.constant 40 : index
    %c0_48 = arith.constant 0 : index
    %147 = vector.load %arg8[%c40, %c0_48] : memref<64x192xf32, #tpu.memory_space<vmem>>, vector<8x192xf32>
    %c40_49 = arith.constant 40 : index
    %c0_50 = arith.constant 0 : index
    %148 = vector.load %arg1[%c40_49, %c0_50] : memref<64x64xf32, #tpu.memory_space<vmem>>, vector<8x64xf32>
    %cst_51 = arith.constant 0.000000e+00 : f32
    %149 = vector.broadcast %cst_51 : f32 to vector<8x64xf32>
    %150 = arith.cmpf one, %148, %149 : vector<8x64xf32>
    %cst_52 = arith.constant dense<0.000000e+00> : vector<8x192xf32>
    %151 = tpu.matmul %144, %7, %cst_52 {dimension_numbers = #tpu.dot_dimension_numbers<[1], [0], [0], [1], [0, 0, 1, 1], [], []>} : vector<8x64xf32>, vector<64x192xf32>, vector<8x192xf32> -> vector<8x192xf32>
    %152 = vector.extract_strided_slice %147 {offsets = [0, 0], sizes = [8, 128], strides = [1, 1]} : vector<8x192xf32> to vector<8x128xf32>
    %153 = vector.extract_strided_slice %151 {offsets = [0, 0], sizes = [8, 128], strides = [1, 1]} : vector<8x192xf32> to vector<8x128xf32>
    %154 = arith.addf %152, %153 : vector<8x128xf32>
    %155 = arith.negf %154 : vector<8x128xf32>
    %156 = math.exp %155 : vector<8x128xf32>
    %cst_53 = arith.constant 1.000000e+00 : f32
    %157 = vector.broadcast %cst_53 : f32 to vector<8x128xf32>
    %158 = arith.addf %157, %156 : vector<8x128xf32>
    %159 = arith.divf %157, %158 : vector<8x128xf32>
    %160 = vector.extract_strided_slice %159 {offsets = [0, 0], sizes = [8, 64], strides = [1, 1]} : vector<8x128xf32> to vector<8x64xf32>
    %161 = vector.extract_strided_slice %159 {offsets = [0, 64], sizes = [8, 64], strides = [1, 1]} : vector<8x128xf32> to vector<8x64xf32>
    %162 = vector.extract_strided_slice %147 {offsets = [0, 128], sizes = [8, 64], strides = [1, 1]} : vector<8x192xf32> to vector<8x64xf32>
    %163 = vector.extract_strided_slice %151 {offsets = [0, 128], sizes = [8, 64], strides = [1, 1]} : vector<8x192xf32> to vector<8x64xf32>
    %164 = arith.addf %163, %10 : vector<8x64xf32>
    %165 = arith.mulf %160, %164 : vector<8x64xf32>
    %166 = arith.addf %162, %165 : vector<8x64xf32>
    %167 = math.tanh %166 : vector<8x64xf32>
    %168 = arith.subf %144, %167 : vector<8x64xf32>
    %169 = arith.mulf %161, %168 : vector<8x64xf32>
    %170 = arith.addf %167, %169 : vector<8x64xf32>
    %171 = arith.select %150, %170, %144 : vector<8x64xi1>, vector<8x64xf32>
    %cst_54 = arith.constant 0.000000e+00 : f32
    %172 = vector.broadcast %cst_54 : f32 to vector<8x64xf32>
    %173 = arith.select %150, %171, %172 : vector<8x64xi1>, vector<8x64xf32>
    %c48 = arith.constant 48 : index
    %c0_55 = arith.constant 0 : index
    %174 = vector.load %arg8[%c48, %c0_55] : memref<64x192xf32, #tpu.memory_space<vmem>>, vector<8x192xf32>
    %c48_56 = arith.constant 48 : index
    %c0_57 = arith.constant 0 : index
    %175 = vector.load %arg1[%c48_56, %c0_57] : memref<64x64xf32, #tpu.memory_space<vmem>>, vector<8x64xf32>
    %cst_58 = arith.constant 0.000000e+00 : f32
    %176 = vector.broadcast %cst_58 : f32 to vector<8x64xf32>
    %177 = arith.cmpf one, %175, %176 : vector<8x64xf32>
    %cst_59 = arith.constant dense<0.000000e+00> : vector<8x192xf32>
    %178 = tpu.matmul %171, %7, %cst_59 {dimension_numbers = #tpu.dot_dimension_numbers<[1], [0], [0], [1], [0, 0, 1, 1], [], []>} : vector<8x64xf32>, vector<64x192xf32>, vector<8x192xf32> -> vector<8x192xf32>
    %179 = vector.extract_strided_slice %174 {offsets = [0, 0], sizes = [8, 128], strides = [1, 1]} : vector<8x192xf32> to vector<8x128xf32>
    %180 = vector.extract_strided_slice %178 {offsets = [0, 0], sizes = [8, 128], strides = [1, 1]} : vector<8x192xf32> to vector<8x128xf32>
    %181 = arith.addf %179, %180 : vector<8x128xf32>
    %182 = arith.negf %181 : vector<8x128xf32>
    %183 = math.exp %182 : vector<8x128xf32>
    %cst_60 = arith.constant 1.000000e+00 : f32
    %184 = vector.broadcast %cst_60 : f32 to vector<8x128xf32>
    %185 = arith.addf %184, %183 : vector<8x128xf32>
    %186 = arith.divf %184, %185 : vector<8x128xf32>
    %187 = vector.extract_strided_slice %186 {offsets = [0, 0], sizes = [8, 64], strides = [1, 1]} : vector<8x128xf32> to vector<8x64xf32>
    %188 = vector.extract_strided_slice %186 {offsets = [0, 64], sizes = [8, 64], strides = [1, 1]} : vector<8x128xf32> to vector<8x64xf32>
    %189 = vector.extract_strided_slice %174 {offsets = [0, 128], sizes = [8, 64], strides = [1, 1]} : vector<8x192xf32> to vector<8x64xf32>
    %190 = vector.extract_strided_slice %178 {offsets = [0, 128], sizes = [8, 64], strides = [1, 1]} : vector<8x192xf32> to vector<8x64xf32>
    %191 = arith.addf %190, %10 : vector<8x64xf32>
    %192 = arith.mulf %187, %191 : vector<8x64xf32>
    %193 = arith.addf %189, %192 : vector<8x64xf32>
    %194 = math.tanh %193 : vector<8x64xf32>
    %195 = arith.subf %171, %194 : vector<8x64xf32>
    %196 = arith.mulf %188, %195 : vector<8x64xf32>
    %197 = arith.addf %194, %196 : vector<8x64xf32>
    %198 = arith.select %177, %197, %171 : vector<8x64xi1>, vector<8x64xf32>
    %cst_61 = arith.constant 0.000000e+00 : f32
    %199 = vector.broadcast %cst_61 : f32 to vector<8x64xf32>
    %200 = arith.select %177, %198, %199 : vector<8x64xi1>, vector<8x64xf32>
    %c56 = arith.constant 56 : index
    %c0_62 = arith.constant 0 : index
    %201 = vector.load %arg8[%c56, %c0_62] : memref<64x192xf32, #tpu.memory_space<vmem>>, vector<8x192xf32>
    %c56_63 = arith.constant 56 : index
    %c0_64 = arith.constant 0 : index
    %202 = vector.load %arg1[%c56_63, %c0_64] : memref<64x64xf32, #tpu.memory_space<vmem>>, vector<8x64xf32>
    %cst_65 = arith.constant 0.000000e+00 : f32
    %203 = vector.broadcast %cst_65 : f32 to vector<8x64xf32>
    %204 = arith.cmpf one, %202, %203 : vector<8x64xf32>
    %cst_66 = arith.constant dense<0.000000e+00> : vector<8x192xf32>
    %205 = tpu.matmul %198, %7, %cst_66 {dimension_numbers = #tpu.dot_dimension_numbers<[1], [0], [0], [1], [0, 0, 1, 1], [], []>} : vector<8x64xf32>, vector<64x192xf32>, vector<8x192xf32> -> vector<8x192xf32>
    %206 = vector.extract_strided_slice %201 {offsets = [0, 0], sizes = [8, 128], strides = [1, 1]} : vector<8x192xf32> to vector<8x128xf32>
    %207 = vector.extract_strided_slice %205 {offsets = [0, 0], sizes = [8, 128], strides = [1, 1]} : vector<8x192xf32> to vector<8x128xf32>
    %208 = arith.addf %206, %207 : vector<8x128xf32>
    %209 = arith.negf %208 : vector<8x128xf32>
    %210 = math.exp %209 : vector<8x128xf32>
    %cst_67 = arith.constant 1.000000e+00 : f32
    %211 = vector.broadcast %cst_67 : f32 to vector<8x128xf32>
    %212 = arith.addf %211, %210 : vector<8x128xf32>
    %213 = arith.divf %211, %212 : vector<8x128xf32>
    %214 = vector.extract_strided_slice %213 {offsets = [0, 0], sizes = [8, 64], strides = [1, 1]} : vector<8x128xf32> to vector<8x64xf32>
    %215 = vector.extract_strided_slice %213 {offsets = [0, 64], sizes = [8, 64], strides = [1, 1]} : vector<8x128xf32> to vector<8x64xf32>
    %216 = vector.extract_strided_slice %201 {offsets = [0, 128], sizes = [8, 64], strides = [1, 1]} : vector<8x192xf32> to vector<8x64xf32>
    %217 = vector.extract_strided_slice %205 {offsets = [0, 128], sizes = [8, 64], strides = [1, 1]} : vector<8x192xf32> to vector<8x64xf32>
    %218 = arith.addf %217, %10 : vector<8x64xf32>
    %219 = arith.mulf %214, %218 : vector<8x64xf32>
    %220 = arith.addf %216, %219 : vector<8x64xf32>
    %221 = math.tanh %220 : vector<8x64xf32>
    %222 = arith.subf %198, %221 : vector<8x64xf32>
    %223 = arith.mulf %215, %222 : vector<8x64xf32>
    %224 = arith.addf %221, %223 : vector<8x64xf32>
    %225 = arith.select %204, %224, %198 : vector<8x64xi1>, vector<8x64xf32>
    %cst_68 = arith.constant 0.000000e+00 : f32
    %226 = vector.broadcast %cst_68 : f32 to vector<8x64xf32>
    %227 = arith.select %204, %225, %226 : vector<8x64xi1>, vector<8x64xf32>
    %228 = tpu.concatenate %38, %65, %92, %119, %146, %173, %200, %227 in 0 : vector<8x64xf32>, vector<8x64xf32>, vector<8x64xf32>, vector<8x64xf32>, vector<8x64xf32>, vector<8x64xf32>, vector<8x64xf32>, vector<8x64xf32> -> vector<64x64xf32>
    %c0_69 = arith.constant 0 : index
    %c0_70 = arith.constant 0 : index
    %229 = vector.load %arg6[%c0_69, %c0_70] : memref<64x64xf32, #tpu.memory_space<vmem>>, vector<64x64xf32>
    tpu.vector_store %arg6[%c0_69, %c0_70], %228 {strides = array<i32>} : memref<64x64xf32, #tpu.memory_space<vmem>>, vector<64x64xf32>,
    %c0_71 = arith.constant 0 : index
    %c0_72 = arith.constant 0 : index
    %230 = vector.load %arg7[%c0_71, %c0_72] : memref<8x64xf32, #tpu.memory_space<vmem>>, vector<8x64xf32>
    tpu.vector_store %arg7[%c0_71, %c0_72], %225 {strides = array<i32>} : memref<8x64xf32, #tpu.memory_space<vmem>>, vector<8x64xf32>,
    return
  }
}

</mosaic_0001>

<llo_original>
// kernel: tpu_custom_call.1
$region0: #{tpu_custom_call.1}
  #allocation0 [shape = 'u32[]', space=smem, size = 0x4, offset = 0x4, fixed_abs, tag = 'smem constant byte address 0x4 - core index']
  #allocation1 [shape = 'u32[144,128]{1,0:T(1,128)}', space=vmem, size = 0x12000, scoped, tag = 'internal scratch']
  #allocation2 [shape = 'f32[64,192]{1,0:T(8,128)}', space=vmem, size = 0x10000, scoped, tag = 'scratch operand']
  %s0 = inlined_call_operand.vmem [shape: f32[64,32], index: 0, kind: input, shape index: {}]
  %s1 = inlined_call_operand.vmem [shape: f32[64,64], index: 1, kind: input, shape index: {}]
  %s2 = inlined_call_operand.hbm [shape: f32[32,192], index: 2, kind: input, shape index: {}]
  %s3 = inlined_call_operand.vmem [shape: f32[1,192], index: 3, kind: input, shape index: {}]
  %s4 = inlined_call_operand.hbm [shape: f32[64,192], index: 4, kind: input, shape index: {}]
  %s5 = inlined_call_operand.vmem [shape: f32[1,64], index: 5, kind: input, shape index: {}]
  %s6 = inlined_call_operand.hbm [shape: f32[64,64], index: 6, kind: output, shape index: {0}]
  %s7 = inlined_call_operand.hbm [shape: f32[8,64], index: 7, kind: output, shape index: {1}]
  %8 = xla_tuple %s6, %s7
  %s9 = sld [smem:[#allocation0]]
  $region50: #{tpu_custom_call.1} parent=0
    _
  %s11 = ssub.s32 1, %s9
  %s12 = scalar_select 0, %s11, %s9
  $region1: #{tpu_custom_call.1} parent=0
    #allocation3 [shape = 'u8[32768]{0}', space=vmem, size = 0x8000, scoped, tag = 'input window, operand 2, single buffered']
    #allocation4 [shape = 's32[1]{0}', space=sflag, size = 0x4, scoped, tag = 'scoped memory for tpu_custom_call.1']
    #allocation5 [shape = 's32[1]{0}', space=sflag, size = 0x4, scoped, tag = 'scoped memory for tpu_custom_call.1']
    #allocation6 [shape = 'u8[65536]{0}', space=vmem, size = 0x10000, scoped, tag = 'input window, operand 4, single buffered']
    #allocation7 [shape = 's32[1]{0}', space=sflag, size = 0x4, scoped, tag = 'scoped memory for tpu_custom_call.1']
    #allocation8 [shape = 'u8[32768]{0}', space=vmem, size = 0x8000, scoped, tag = 'output window, operand 0, single buffered']
    #allocation9 [shape = 'u8[4096]{0}', space=vmem, size = 0x1000, scoped, tag = 'output window, operand 1, single buffered']
    #allocation10 [shape = 's32[1]{0}', space=sflag, size = 0x4, scoped, tag = 'scoped memory for tpu_custom_call.1']
    %13 = vsyncpa [#allocation4], 0
    %14 = vsyncpa [#allocation7], 0
    %15 = vsyncpa [#allocation5], 0
    %16 = vsyncpa [#allocation10], 0
    // Predicated region
    $region2: #{tpu_custom_call.1} parent=1 // pred_check
      _
    $region3: #{tpu_custom_call.1} parent=1 // pred_check_branch
      %18 = sbr.rel (0) target = $region5
    $region4: #{tpu_custom_call.1} parent=1 // pred_region
      _
    $region5: #{tpu_custom_call.1} parent=1 // pred_fallthru
      _
    // Predicated region
    $region6: #{tpu_custom_call.1} parent=1 // pred_check
      _
    $region7: #{tpu_custom_call.1} parent=1 // pred_check_branch
      %20 = sbr.rel (0) target = $region9
    $region8: #{tpu_custom_call.1} parent=1 // pred_region
      _
    $region9: #{tpu_custom_call.1} parent=1 // pred_fallthru
      _
    // Predicated region
    $region10: #{tpu_custom_call.1} parent=1 // pred_check
      _
    $region11: #{tpu_custom_call.1} parent=1 // pred_check_branch
      %22 = sbr.rel (0) target = $region13
    $region12: #{tpu_custom_call.1} parent=1 // pred_region
      %s24 = ssub.s32 1024, 1024
      %25 = vsyncadd [#allocation4], %s24
      %s26 = sshll.u32 [#allocation3], 4
      %s27 = int_to_ptr.vmem [resolvable:$true] %s26
      %32 = dma.hbm_to_vmem [thread:$0]  %s2, 1024, %s27, [#allocation4], 256, 256, 16
    $region13: #{tpu_custom_call.1} parent=1 // pred_fallthru
      _
    // Predicated region
    $region14: #{tpu_custom_call.1} parent=1 // pred_check
      _
    $region15: #{tpu_custom_call.1} parent=1 // pred_check_branch
      %34 = sbr.rel (0) target = $region17
    $region16: #{tpu_custom_call.1} parent=1 // pred_region
      _
    $region17: #{tpu_custom_call.1} parent=1 // pred_fallthru
      _
    // Predicated region
    $region18: #{tpu_custom_call.1} parent=1 // pred_check
      _
    $region19: #{tpu_custom_call.1} parent=1 // pred_check_branch
      %36 = sbr.rel (0) target = $region21
    $region20: #{tpu_custom_call.1} parent=1 // pred_region
      %s38 = ssub.s32 2048, 2048
      %39 = vsyncadd [#allocation7], %s38
      %s40 = sshll.u32 [#allocation6], 4
      %s41 = int_to_ptr.vmem [resolvable:$true] %s40
      %46 = dma.hbm_to_vmem [thread:$0]  %s4, 2048, %s41, [#allocation7], 256, 256, 16
    $region21: #{tpu_custom_call.1} parent=1 // pred_fallthru
      _
    // Predicated region
    $region22: #{tpu_custom_call.1} parent=1 // pred_check
      _
    $region23: #{tpu_custom_call.1} parent=1 // pred_check_branch
      %48 = sbr.rel (0) target = $region25
    $region24: #{tpu_custom_call.1} parent=1 // pred_region
      _
    $region25: #{tpu_custom_call.1} parent=1 // pred_fallthru
      _
    // Predicated region
    $region26: #{tpu_custom_call.1} parent=1 // pred_check
      _
    $region27: #{tpu_custom_call.1} parent=1 // pred_check_branch
      %50 = sbr.rel (0) target = $region29
    $region28: #{tpu_custom_call.1} parent=1 // pred_region
      %51 = dma.done [#allocation4], 1024
    $region29: #{tpu_custom_call.1} parent=1 // pred_fallthru
      _
    // Predicated region
    $region30: #{tpu_custom_call.1} parent=1 // pred_check
      _
    $region31: #{tpu_custom_call.1} parent=1 // pred_check_branch
      %53 = sbr.rel (0) target = $region33
    $region32: #{tpu_custom_call.1} parent=1 // pred_region
      %54 = dma.done [#allocation7], 2048
    $region33: #{tpu_custom_call.1} parent=1 // pred_fallthru
      _
    %v55 = vld [vmem:[%s0] sm:$0xff]
    %v56 = vld [vmem:[%s0 + $0x8] sm:$0xff]
    %v57 = vld [vmem:[%s0 + $0x10] sm:$0xff]
    %v58 = vld [vmem:[%s0 + $0x18] sm:$0xff]
    %v59 = vld [vmem:[%s0 + $0x20] sm:$0xff]
    %v60 = vld [vmem:[%s0 + $0x28] sm:$0xff]
    %v61 = vld [vmem:[%s0 + $0x30] sm:$0xff]
    %v62 = vld [vmem:[%s0 + $0x38] sm:$0xff]
    %v63 = vld [vmem:[#allocation3] sm:$0xff]
    %v64 = vld [vmem:[#allocation3 + $0x8] sm:$0xff]
    %v65 = vld [vmem:[#allocation3 + $0x10] sm:$0xff]
    %v66 = vld [vmem:[#allocation3 + $0x18] sm:$0xff]
    %v67 = vld [vmem:[#allocation3 + $0x20] sm:$0xff]
    %v68 = vld [vmem:[#allocation3 + $0x28] sm:$0xff]
    %v69 = vld [vmem:[#allocation3 + $0x30] sm:$0xff]
    %v70 = vld [vmem:[#allocation3 + $0x38] sm:$0xff]
    %v71 = vld [vmem:[%s3] sm:$0x3]
    %v73 = vlaneseq
    %v74 = vshrl.u32 %v73, 7
    %v75 = vsub.s32 0, %v74
    %v76 = vrot.slane %v71, %v75
    %v77 = vlaneseq
    %v78 = vshrl.u32 %v77, 7
    %v79 = vsub.s32 1, %v78
    %v80 = vrot.slane %v71, %v79
    %vm83 = vcmask 261120
    %v85 = vsel %vm83, %v55, 0
    %v88 = vsel %vm83, %v56, 0
    %v91 = vsel %vm83, %v57, 0
    %v94 = vsel %vm83, %v58, 0
    %v97 = vsel %vm83, %v59, 0
    %v100 = vsel %vm83, %v60, 0
    %v103 = vsel %vm83, %v61, 0
    %v106 = vsel %vm83, %v62, 0
    %108 = vmatprep.subr.mxu0 %v64
    %109 = vmatpush1.msra.mxu0 %v63
    %110 = vmatprep.subr.mxu0 %v66
    %111 = vmatpush1.msra.mxu0 %v65
    %112 = vmatprep.subr.mxu0 %v68
    %113 = vmatpush1.msra.mxu0 %v67
    %114 = vmatprep.subr.mxu0 %v70
    %115 = vmatpush1.msra.mxu0 %v69
    %116 = vmatprep.subr.mxu0 0.0
    %117 = vmatpush1.msra.mxu0 0.0
    %118 = vmatprep.subr.mxu0 0.0
    %119 = vmatpush1.msra.mxu0 0.0
    %120 = vmatprep.subr.mxu0 0.0
    %121 = vmatpush1.msra.mxu0 0.0
    %122 = vmatprep.subr.mxu0 0.0
    %123 = vmatpush1.msra.mxu0 0.0
    %124 = vmatprep.subr.mxu0 0.0
    %125 = vmatpush1.msra.mxu0 0.0
    %126 = vmatprep.subr.mxu0 0.0
    %127 = vmatpush1.msra.mxu0 0.0
    %128 = vmatprep.subr.mxu0 0.0
    %129 = vmatpush1.msra.mxu0 0.0
    %130 = vmatprep.subr.mxu0 0.0
    %131 = vmatpush1.msra.mxu0 0.0
    %132 = vmatprep.subr.mxu0 0.0
    %133 = vmatpush1.msra.mxu0 0.0
    %134 = vmatprep.subr.mxu0 0.0
    %135 = vmatpush1.msra.mxu0 0.0
    %136 = vmatprep.subr.mxu0 0.0
    %137 = vmatpush1.msra.mxu0 0.0
    %138 = vmatprep.subr.mxu0 0.0
    %139 = vmatpush1.msra.mxu0 0.0
    %140 = vmatprep.subr.mxu0 0.0
    %141 = vmatpush1.msra.mxu0 0.0
    %142 = vmatprep.subr.mxu0 0.0
    %143 = vmatpush1.msra.mxu0 0.0
    %144 = vmatprep.subr.mxu0 0.0
    %145 = vmatpush1.msra.mxu0 0.0
    %146 = vmatprep.subr.mxu0 0.0
    %147 = vmatpush1.msra.mxu0 0.0
    %148 = vmatprep.subr.mxu0 0.0
    %149 = vmatpush1.msra.mxu0 0.0
    %150 = vmatprep.subr.mxu0 0.0
    %151 = vmatpush1.msra.mxu0 0.0
    %152 = vmatprep.subr.mxu0 0.0
    %153 = vmatpush1.msra.mxu0 0.0
    %154 = vmatprep.subr.mxu0 0.0
    %155 = vmatpush1.msra.mxu0 0.0
    %156 = vmatprep.subr.mxu0 0.0
    %157 = vmatpush1.msra.mxu0 0.0
    %158 = vmatprep.subr.mxu0 0.0
    %159 = vmatpush1.msra.mxu0 0.0
    %160 = vmatprep.subr.mxu0 0.0
    %161 = vmatpush1.msra.mxu0 0.0
    %162 = vmatprep.subr.mxu0 0.0
    %163 = vmatpush1.msra.mxu0 0.0
    %164 = vmatprep.subr.mxu0 0.0
    %165 = vmatpush1.msra.mxu0 0.0
    %166 = vmatprep.subr.mxu0 0.0
    %167 = vmatpush1.msra.mxu0 0.0
    %168 = vmatprep.subr.mxu0 0.0
    %169 = vmatpush1.msra.mxu0 0.0
    %170 = vmatprep.subr.mxu0 0.0
    %171 = vmatpush1.msra.mxu0 0.0
    %172 = vmatprep.mubr.f32.mxu0 0.0
    %173 = vmatmul.mubr.f32.gmra.mrb[0].mxu0 %v85
    %v174 = vpop.f32.mrb[0].mxu0
    %v175 = vadd.f32 %v76, %v174
    %v176 = vpop.f32.mrb[0].mxu0
    %v177 = vadd.f32 %v80, %v176
    %178 = vmatprep.mubr.f32.mxu0 0.0
    %179 = vmatmul.mubr.f32.gmra.mrb[0].mxu0 %v88
    %v180 = vpop.f32.mrb[0].mxu0
    %v181 = vadd.f32 %v76, %v180
    %v182 = vpop.f32.mrb[0].mxu0
    %v183 = vadd.f32 %v80, %v182
    %184 = vmatprep.mubr.f32.mxu0 0.0
    %185 = vmatmul.mubr.f32.gmra.mrb[0].mxu0 %v91
    %v186 = vpop.f32.mrb[0].mxu0
    %v187 = vadd.f32 %v76, %v186
    %v188 = vpop.f32.mrb[0].mxu0
    %v189 = vadd.f32 %v80, %v188
    %190 = vmatprep.mubr.f32.mxu0 0.0
    %191 = vmatmul.mubr.f32.gmra.mrb[0].mxu0 %v94
    %v192 = vpop.f32.mrb[0].mxu0
    %v193 = vadd.f32 %v76, %v192
    %v194 = vpop.f32.mrb[0].mxu0
    %v195 = vadd.f32 %v80, %v194
    %196 = vmatprep.mubr.f32.mxu0 0.0
    %197 = vmatmul.mubr.f32.gmra.mrb[0].mxu0 %v97
    %v198 = vpop.f32.mrb[0].mxu0
    %v199 = vadd.f32 %v76, %v198
    %v200 = vpop.f32.mrb[0].mxu0
    %v201 = vadd.f32 %v80, %v200
    %202 = vmatprep.mubr.f32.mxu0 0.0
    %203 = vmatmul.mubr.f32.gmra.mrb[0].mxu0 %v100
    %v204 = vpop.f32.mrb[0].mxu0
    %v205 = vadd.f32 %v76, %v204
    %v206 = vpop.f32.mrb[0].mxu0
    %v207 = vadd.f32 %v80, %v206
    %208 = vmatprep.mubr.f32.mxu0 0.0
    %209 = vmatmul.mubr.f32.gmra.mrb[0].mxu0 %v103
    %v210 = vpop.f32.mrb[0].mxu0
    %v211 = vadd.f32 %v76, %v210
    %v212 = vpop.f32.mrb[0].mxu0
    %v213 = vadd.f32 %v80, %v212
    %214 = vmatprep.mubr.f32.mxu0 0.0
    %215 = vmatmul.mubr.f32.gmra.mrb[0].mxu0 %v106
    %v216 = vpop.f32.mrb[0].mxu0
    %v217 = vadd.f32 %v76, %v216
    %v218 = vpop.f32.mrb[0].mxu0
    %v219 = vadd.f32 %v80, %v218
    %220 = vdwg.mxu0
    %221 = vst [vmem:[#allocation2] sm:$0xff] %v175
    %vm222 = vcmask 523264
    %223 = vst.msk [vmem:[#allocation2 + $0x8] sm:$0xff] %vm222, %v177
    %224 = vst [vmem:[#allocation2 + $0x10] sm:$0xff] %v181
    %225 = vst.msk [vmem:[#allocation2 + $0x18] sm:$0xff] %vm222, %v183
    %226 = vst [vmem:[#allocation2 + $0x20] sm:$0xff] %v187
    %227 = vst.msk [vmem:[#allocation2 + $0x28] sm:$0xff] %vm222, %v189
    %228 = vst [vmem:[#allocation2 + $0x30] sm:$0xff] %v193
    %229 = vst.msk [vmem:[#allocation2 + $0x38] sm:$0xff] %vm222, %v195
    %230 = vst [vmem:[#allocation2 + $0x40] sm:$0xff] %v199
    %231 = vst.msk [vmem:[#allocation2 + $0x48] sm:$0xff] %vm222, %v201
    %232 = vst [vmem:[#allocation2 + $0x50] sm:$0xff] %v205
    %233 = vst.msk [vmem:[#allocation2 + $0x58] sm:$0xff] %vm222, %v207
    %234 = vst [vmem:[#allocation2 + $0x60] sm:$0xff] %v211
    %235 = vst.msk [vmem:[#allocation2 + $0x68] sm:$0xff] %vm222, %v213
    %236 = vst [vmem:[#allocation2 + $0x70] sm:$0xff] %v217
    %237 = vst.msk [vmem:[#allocation2 + $0x78] sm:$0xff] %vm222, %v219
    %v238 = vld [vmem:[#allocation6] sm:$0xff]
    %v239 = vld [vmem:[#allocation6 + $0x8] sm:$0xff]
    %v240 = vld [vmem:[#allocation6 + $0x10] sm:$0xff]
    %v241 = vld [vmem:[#allocation6 + $0x18] sm:$0xff]
    %v242 = vld [vmem:[#allocation6 + $0x20] sm:$0xff]
    %v243 = vld [vmem:[#allocation6 + $0x28] sm:$0xff]
    %v244 = vld [vmem:[#allocation6 + $0x30] sm:$0xff]
    %v245 = vld [vmem:[#allocation6 + $0x38] sm:$0xff]
    %v246 = vld [vmem:[#allocation6 + $0x40] sm:$0xff]
    %v247 = vld [vmem:[#allocation6 + $0x48] sm:$0xff]
    %v248 = vld [vmem:[#allocation6 + $0x50] sm:$0xff]
    %v249 = vld [vmem:[#allocation6 + $0x58] sm:$0xff]
    %v250 = vld [vmem:[#allocation6 + $0x60] sm:$0xff]
    %v251 = vld [vmem:[#allocation6 + $0x68] sm:$0xff]
    %v252 = vld [vmem:[#allocation6 + $0x70] sm:$0xff]
    %v253 = vld [vmem:[#allocation6 + $0x78] sm:$0xff]
    %v254 = vld [vmem:[%s5] sm:$0x1]
    %v256 = vlaneseq
    %v257 = vshrl.u32 %v256, 7
    %v258 = vsub.s32 0, %v257
    %v259 = vrot.slane %v254, %v258
    %v261 = vld [vmem:[#allocation2] sm:$0xff]
    %v262 = vld [vmem:[#allocation2 + $0x8] sm:$0xff]
    %v263 = vld [vmem:[%s1] sm:$0xff]
    %vm264 = vcmp.ne.f32.partialorder %v263, 0.0
    %v266 = vsel %vm222, 0.0, 0
    %268 = vmatprep.subr.mxu0 %v239
    %269 = vmatpush1.msra.mxu0 %v238
    %270 = vmatprep.subr.mxu0 %v241
    %271 = vmatpush1.msra.mxu0 %v240
    %272 = vmatprep.subr.mxu0 %v243
    %273 = vmatpush1.msra.mxu0 %v242
    %274 = vmatprep.subr.mxu0 %v245
    %275 = vmatpush1.msra.mxu0 %v244
    %276 = vmatprep.subr.mxu0 %v247
    %277 = vmatpush1.msra.mxu0 %v246
    %278 = vmatprep.subr.mxu0 %v249
    %279 = vmatpush1.msra.mxu0 %v248
    %280 = vmatprep.subr.mxu0 %v251
    %281 = vmatpush1.msra.mxu0 %v250
    %282 = vmatprep.subr.mxu0 %v253
    %283 = vmatpush1.msra.mxu0 %v252
    %284 = vmatprep.subr.mxu0 0.0
    %285 = vmatpush1.msra.mxu0 0.0
    %286 = vmatprep.subr.mxu0 0.0
    %287 = vmatpush1.msra.mxu0 0.0
    %288 = vmatprep.subr.mxu0 0.0
    %289 = vmatpush1.msra.mxu0 0.0
    %290 = vmatprep.subr.mxu0 0.0
    %291 = vmatpush1.msra.mxu0 0.0
    %292 = vmatprep.subr.mxu0 0.0
    %293 = vmatpush1.msra.mxu0 0.0
    %294 = vmatprep.subr.mxu0 0.0
    %295 = vmatpush1.msra.mxu0 0.0
    %296 = vmatprep.subr.mxu0 0.0
    %297 = vmatpush1.msra.mxu0 0.0
    %298 = vmatprep.subr.mxu0 0.0
    %299 = vmatpush1.msra.mxu0 0.0
    %300 = vmatprep.subr.mxu0 0.0
    %301 = vmatpush1.msra.mxu0 0.0
    %302 = vmatprep.subr.mxu0 0.0
    %303 = vmatpush1.msra.mxu0 0.0
    %304 = vmatprep.subr.mxu0 0.0
    %305 = vmatpush1.msra.mxu0 0.0
    %306 = vmatprep.subr.mxu0 0.0
    %307 = vmatpush1.msra.mxu0 0.0
    %308 = vmatprep.subr.mxu0 0.0
    %309 = vmatpush1.msra.mxu0 0.0
    %310 = vmatprep.subr.mxu0 0.0
    %311 = vmatpush1.msra.mxu0 0.0
    %312 = vmatprep.subr.mxu0 0.0
    %313 = vmatpush1.msra.mxu0 0.0
    %314 = vmatprep.subr.mxu0 0.0
    %315 = vmatpush1.msra.mxu0 0.0
    %316 = vmatprep.subr.mxu0 0.0
    %317 = vmatpush1.msra.mxu0 0.0
    %318 = vmatprep.subr.mxu0 0.0
    %319 = vmatpush1.msra.mxu0 0.0
    %320 = vmatprep.subr.mxu0 0.0
    %321 = vmatpush1.msra.mxu0 0.0
    %322 = vmatprep.subr.mxu0 0.0
    %323 = vmatpush1.msra.mxu0 0.0
    %324 = vmatprep.subr.mxu0 0.0
    %325 = vmatpush1.msra.mxu0 0.0
    %326 = vmatprep.subr.mxu0 0.0
    %327 = vmatpush1.msra.mxu0 0.0
    %328 = vmatprep.subr.mxu0 0.0
    %329 = vmatpush1.msra.mxu0 0.0
    %330 = vmatprep.subr.mxu0 0.0
    %331 = vmatpush1.msra.mxu0 0.0
    %332 = vmatprep.mubr.f32.mxu0 0.0
    %333 = vmatmul.mubr.f32.gmra.mrb[0].mxu0 %v266
    %v334 = vpop.f32.mrb[0].mxu0
    %v335 = vadd.f32 0.0, %v334
    %v336 = vpop.f32.mrb[0].mxu0
    %v337 = vadd.f32 0.0, %v336
    %338 = vdwg.mxu0
    %v339 = vadd.f32 %v261, %v335
    %v340 = vxor.u32 %v339, 2147483648
    %v341 = vmul.f32 %v340, 1.442695
    %v342 = vpow.pop %v341
    %v343 = vadd.f32 %v342, 1.0
    %v344 = vrcp.pop %v343
    %v345 = vmul.f32 1.0, %v344
    %v346 = vadd.f32 %v337, %v259
    %v347 = vmul.f32 %v345, %v346
    %v348 = vadd.f32 %v262, %v347
    %v349 = vtanh.pop %v348
    %v350 = vsub.f32 0.0, %v349
    %352 = vrot.lane.b32.xlu0 %v350, 64
    %v353 = vpop.permute.xlu0 %352
    %v355 = vmul.f32 %v345, %v353
    %357 = vrot.lane.b32.xlu0 %v355, 64
    %v358 = vpop.permute.xlu0 %357
    %v360 = vadd.f32 %v349, %v358
    %v361 = vsel %vm264, %v360, 0.0
    %v362 = vld [vmem:[#allocation2 + $0x10] sm:$0xff]
    %v363 = vld [vmem:[#allocation2 + $0x18] sm:$0xff]
    %v364 = vld [vmem:[%s1 + $0x8] sm:$0xff]
    %vm365 = vcmp.ne.f32.partialorder %v364, 0.0
    %v367 = vsel %vm222, %v361, 0
    %369 = vmatprep.subr.mxu0 %v239
    %370 = vmatpush1.msra.mxu0 %v238
    %371 = vmatprep.subr.mxu0 %v241
    %372 = vmatpush1.msra.mxu0 %v240
    %373 = vmatprep.subr.mxu0 %v243
    %374 = vmatpush1.msra.mxu0 %v242
    %375 = vmatprep.subr.mxu0 %v245
    %376 = vmatpush1.msra.mxu0 %v244
    %377 = vmatprep.subr.mxu0 %v247
    %378 = vmatpush1.msra.mxu0 %v246
    %379 = vmatprep.subr.mxu0 %v249
    %380 = vmatpush1.msra.mxu0 %v248
    %381 = vmatprep.subr.mxu0 %v251
    %382 = vmatpush1.msra.mxu0 %v250
    %383 = vmatprep.subr.mxu0 %v253
    %384 = vmatpush1.msra.mxu0 %v252
    %385 = vmatprep.subr.mxu0 0.0
    %386 = vmatpush1.msra.mxu0 0.0
    %387 = vmatprep.subr.mxu0 0.0
    %388 = vmatpush1.msra.mxu0 0.0
    %389 = vmatprep.subr.mxu0 0.0
    %390 = vmatpush1.msra.mxu0 0.0
    %391 = vmatprep.subr.mxu0 0.0
    %392 = vmatpush1.msra.mxu0 0.0
    %393 = vmatprep.subr.mxu0 0.0
    %394 = vmatpush1.msra.mxu0 0.0
    %395 = vmatprep.subr.mxu0 0.0
    %396 = vmatpush1.msra.mxu0 0.0
    %397 = vmatprep.subr.mxu0 0.0
    %398 = vmatpush1.msra.mxu0 0.0
    %399 = vmatprep.subr.mxu0 0.0
    %400 = vmatpush1.msra.mxu0 0.0
    %401 = vmatprep.subr.mxu0 0.0
    %402 = vmatpush1.msra.mxu0 0.0
    %403 = vmatprep.subr.mxu0 0.0
    %404 = vmatpush1.msra.mxu0 0.0
    %405 = vmatprep.subr.mxu0 0.0
    %406 = vmatpush1.msra.mxu0 0.0
    %407 = vmatprep.subr.mxu0 0.0
    %408 = vmatpush1.msra.mxu0 0.0
    %409 = vmatprep.subr.mxu0 0.0
    %410 = vmatpush1.msra.mxu0 0.0
    %411 = vmatprep.subr.mxu0 0.0
    %412 = vmatpush1.msra.mxu0 0.0
    %413 = vmatprep.subr.mxu0 0.0
    %414 = vmatpush1.msra.mxu0 0.0
    %415 = vmatprep.subr.mxu0 0.0
    %416 = vmatpush1.msra.mxu0 0.0
    %417 = vmatprep.subr.mxu0 0.0
    %418 = vmatpush1.msra.mxu0 0.0
    %419 = vmatprep.subr.mxu0 0.0
    %420 = vmatpush1.msra.mxu0 0.0
    %421 = vmatprep.subr.mxu0 0.0
    %422 = vmatpush1.msra.mxu0 0.0
    %423 = vmatprep.subr.mxu0 0.0
    %424 = vmatpush1.msra.mxu0 0.0
    %425 = vmatprep.subr.mxu0 0.0
    %426 = vmatpush1.msra.mxu0 0.0
    %427 = vmatprep.subr.mxu0 0.0
    %428 = vmatpush1.msra.mxu0 0.0
    %429 = vmatprep.subr.mxu0 0.0
    %430 = vmatpush1.msra.mxu0 0.0
    %431 = vmatprep.subr.mxu0 0.0
    %432 = vmatpush1.msra.mxu0 0.0
    %433 = vmatprep.mubr.f32.mxu0 0.0
    %434 = vmatmul.mubr.f32.gmra.mrb[0].mxu0 %v367
    %v435 = vpop.f32.mrb[0].mxu0
    %v436 = vadd.f32 0.0, %v435
    %v437 = vpop.f32.mrb[0].mxu0
    %v438 = vadd.f32 0.0, %v437
    %439 = vdwg.mxu0
    %v440 = vadd.f32 %v362, %v436
    %v441 = vxor.u32 %v440, 2147483648
    %v442 = vmul.f32 %v441, 1.442695
    %v443 = vpow.pop %v442
    %v444 = vadd.f32 %v443, 1.0
    %v445 = vrcp.pop %v444
    %v446 = vmul.f32 1.0, %v445
    %v447 = vadd.f32 %v438, %v259
    %v448 = vmul.f32 %v446, %v447
    %v449 = vadd.f32 %v363, %v448
    %v450 = vtanh.pop %v449
    %v451 = vsub.f32 %v361, %v450
    %453 = vrot.lane.b32.xlu0 %v451, 64
    %v454 = vpop.permute.xlu0 %453
    %v456 = vmul.f32 %v446, %v454
    %458 = vrot.lane.b32.xlu0 %v456, 64
    %v459 = vpop.permute.xlu0 %458
    %v461 = vadd.f32 %v450, %v459
    %v462 = vsel %vm365, %v461, %v361
    %v463 = vsel %vm365, %v461, 0.0
    %v464 = vld [vmem:[#allocation2 + $0x20] sm:$0xff]
    %v465 = vld [vmem:[#allocation2 + $0x28] sm:$0xff]
    %v466 = vld [vmem:[%s1 + $0x10] sm:$0xff]
    %vm467 = vcmp.ne.f32.partialorder %v466, 0.0
    %v469 = vsel %vm222, %v462, 0
    %471 = vmatprep.subr.mxu0 %v239
    %472 = vmatpush1.msra.mxu0 %v238
    %473 = vmatprep.subr.mxu0 %v241
    %474 = vmatpush1.msra.mxu0 %v240
    %475 = vmatprep.subr.mxu0 %v243
    %476 = vmatpush1.msra.mxu0 %v242
    %477 = vmatprep.subr.mxu0 %v245
    %478 = vmatpush1.msra.mxu0 %v244
    %479 = vmatprep.subr.mxu0 %v247
    %480 = vmatpush1.msra.mxu0 %v246
    %481 = vmatprep.subr.mxu0 %v249
    %482 = vmatpush1.msra.mxu0 %v248
    %483 = vmatprep.subr.mxu0 %v251
    %484 = vmatpush1.msra.mxu0 %v250
    %485 = vmatprep.subr.mxu0 %v253
    %486 = vmatpush1.msra.mxu0 %v252
    %487 = vmatprep.subr.mxu0 0.0
    %488 = vmatpush1.msra.mxu0 0.0
    %489 = vmatprep.subr.mxu0 0.0
    %490 = vmatpush1.msra.mxu0 0.0
    %491 = vmatprep.subr.mxu0 0.0
    %492 = vmatpush1.msra.mxu0 0.0
    %493 = vmatprep.subr.mxu0 0.0
    %494 = vmatpush1.msra.mxu0 0.0
    %495 = vmatprep.subr.mxu0 0.0
    %496 = vmatpush1.msra.mxu0 0.0
    %497 = vmatprep.subr.mxu0 0.0
    %498 = vmatpush1.msra.mxu0 0.0
    %499 = vmatprep.subr.mxu0 0.0
    %500 = vmatpush1.msra.mxu0 0.0
    %501 = vmatprep.subr.mxu0 0.0
    %502 = vmatpush1.msra.mxu0 0.0
    %503 = vmatprep.subr.mxu0 0.0
    %504 = vmatpush1.msra.mxu0 0.0
    %505 = vmatprep.subr.mxu0 0.0
    %506 = vmatpush1.msra.mxu0 0.0
    %507 = vmatprep.subr.mxu0 0.0
    %508 = vmatpush1.msra.mxu0 0.0
    %509 = vmatprep.subr.mxu0 0.0
    %510 = vmatpush1.msra.mxu0 0.0
    %511 = vmatprep.subr.mxu0 0.0
    %512 = vmatpush1.msra.mxu0 0.0
    %513 = vmatprep.subr.mxu0 0.0
    %514 = vmatpush1.msra.mxu0 0.0
    %515 = vmatprep.subr.mxu0 0.0
    %516 = vmatpush1.msra.mxu0 0.0
    %517 = vmatprep.subr.mxu0 0.0
    %518 = vmatpush1.msra.mxu0 0.0
    %519 = vmatprep.subr.mxu0 0.0
    %520 = vmatpush1.msra.mxu0 0.0
    %521 = vmatprep.subr.mxu0 0.0
    %522 = vmatpush1.msra.mxu0 0.0
    %523 = vmatprep.subr.mxu0 0.0
    %524 = vmatpush1.msra.mxu0 0.0
    %525 = vmatprep.subr.mxu0 0.0
    %526 = vmatpush1.msra.mxu0 0.0
    %527 = vmatprep.subr.mxu0 0.0
    %528 = vmatpush1.msra.mxu0 0.0
    %529 = vmatprep.subr.mxu0 0.0
    %530 = vmatpush1.msra.mxu0 0.0
    %531 = vmatprep.subr.mxu0 0.0
    %532 = vmatpush1.msra.mxu0 0.0
    %533 = vmatprep.subr.mxu0 0.0
    %534 = vmatpush1.msra.mxu0 0.0
    %535 = vmatprep.mubr.f32.mxu0 0.0
    %536 = vmatmul.mubr.f32.gmra.mrb[0].mxu0 %v469
    %v537 = vpop.f32.mrb[0].mxu0
    %v538 = vadd.f32 0.0, %v537
    %v539 = vpop.f32.mrb[0].mxu0
    %v540 = vadd.f32 0.0, %v539
    %541 = vdwg.mxu0
    %v542 = vadd.f32 %v464, %v538
    %v543 = vxor.u32 %v542, 2147483648
    %v544 = vmul.f32 %v543, 1.442695
    %v545 = vpow.pop %v544
    %v546 = vadd.f32 %v545, 1.0
    %v547 = vrcp.pop %v546
    %v548 = vmul.f32 1.0, %v547
    %v549 = vadd.f32 %v540, %v259
    %v550 = vmul.f32 %v548, %v549
    %v551 = vadd.f32 %v465, %v550
    %v552 = vtanh.pop %v551
    %v553 = vsub.f32 %v462, %v552
    %555 = vrot.lane.b32.xlu0 %v553, 64
    %v556 = vpop.permute.xlu0 %555
    %v558 = vmul.f32 %v548, %v556
    %560 = vrot.lane.b32.xlu0 %v558, 64
    %v561 = vpop.permute.xlu0 %560
    %v563 = vadd.f32 %v552, %v561
    %v564 = vsel %vm467, %v563, %v462
    %v565 = vsel %vm467, %v563, 0.0
    %v566 = vld [vmem:[#allocation2 + $0x30] sm:$0xff]
    %v567 = vld [vmem:[#allocation2 + $0x38] sm:$0xff]
    %v568 = vld [vmem:[%s1 + $0x18] sm:$0xff]
    %vm569 = vcmp.ne.f32.partialorder %v568, 0.0
    %v571 = vsel %vm222, %v564, 0
    %573 = vmatprep.subr.mxu0 %v239
    %574 = vmatpush1.msra.mxu0 %v238
    %575 = vmatprep.subr.mxu0 %v241
    %576 = vmatpush1.msra.mxu0 %v240
    %577 = vmatprep.subr.mxu0 %v243
    %578 = vmatpush1.msra.mxu0 %v242
    %579 = vmatprep.subr.mxu0 %v245
    %580 = vmatpush1.msra.mxu0 %v244
    %581 = vmatprep.subr.mxu0 %v247
    %582 = vmatpush1.msra.mxu0 %v246
    %583 = vmatprep.subr.mxu0 %v249
    %584 = vmatpush1.msra.mxu0 %v248
    %585 = vmatprep.subr.mxu0 %v251
    %586 = vmatpush1.msra.mxu0 %v250
    %587 = vmatprep.subr.mxu0 %v253
    %588 = vmatpush1.msra.mxu0 %v252
    %589 = vmatprep.subr.mxu0 0.0
    %590 = vmatpush1.msra.mxu0 0.0
    %591 = vmatprep.subr.mxu0 0.0
    %592 = vmatpush1.msra.mxu0 0.0
    %593 = vmatprep.subr.mxu0 0.0
    %594 = vmatpush1.msra.mxu0 0.0
    %595 = vmatprep.subr.mxu0 0.0
    %596 = vmatpush1.msra.mxu0 0.0
    %597 = vmatprep.subr.mxu0 0.0
    %598 = vmatpush1.msra.mxu0 0.0
    %599 = vmatprep.subr.mxu0 0.0
    %600 = vmatpush1.msra.mxu0 0.0
    %601 = vmatprep.subr.mxu0 0.0
    %602 = vmatpush1.msra.mxu0 0.0
    %603 = vmatprep.subr.mxu0 0.0
    %604 = vmatpush1.msra.mxu0 0.0
    %605 = vmatprep.subr.mxu0 0.0
    %606 = vmatpush1.msra.mxu0 0.0
    %607 = vmatprep.subr.mxu0 0.0
    %608 = vmatpush1.msra.mxu0 0.0
    %609 = vmatprep.subr.mxu0 0.0
    %610 = vmatpush1.msra.mxu0 0.0
    %611 = vmatprep.subr.mxu0 0.0
    %612 = vmatpush1.msra.mxu0 0.0
    %613 = vmatprep.subr.mxu0 0.0
    %614 = vmatpush1.msra.mxu0 0.0
    %615 = vmatprep.subr.mxu0 0.0
    %616 = vmatpush1.msra.mxu0 0.0
    %617 = vmatprep.subr.mxu0 0.0
    %618 = vmatpush1.msra.mxu0 0.0
    %619 = vmatprep.subr.mxu0 0.0
    %620 = vmatpush1.msra.mxu0 0.0
    %621 = vmatprep.subr.mxu0 0.0
    %622 = vmatpush1.msra.mxu0 0.0
    %623 = vmatprep.subr.mxu0 0.0
    %624 = vmatpush1.msra.mxu0 0.0
    %625 = vmatprep.subr.mxu0 0.0
    %626 = vmatpush1.msra.mxu0 0.0
    %627 = vmatprep.subr.mxu0 0.0
    %628 = vmatpush1.msra.mxu0 0.0
    %629 = vmatprep.subr.mxu0 0.0
    %630 = vmatpush1.msra.mxu0 0.0
    %631 = vmatprep.subr.mxu0 0.0
    %632 = vmatpush1.msra.mxu0 0.0
    %633 = vmatprep.subr.mxu0 0.0
    %634 = vmatpush1.msra.mxu0 0.0
    %635 = vmatprep.subr.mxu0 0.0
    %636 = vmatpush1.msra.mxu0 0.0
    %637 = vmatprep.mubr.f32.mxu0 0.0
    %638 = vmatmul.mubr.f32.gmra.mrb[0].mxu0 %v571
    %v639 = vpop.f32.mrb[0].mxu0
    %v640 = vadd.f32 0.0, %v639
    %v641 = vpop.f32.mrb[0].mxu0
    %v642 = vadd.f32 0.0, %v641
    %643 = vdwg.mxu0
    %v644 = vadd.f32 %v566, %v640
    %v645 = vxor.u32 %v644, 2147483648
    %v646 = vmul.f32 %v645, 1.442695
    %v647 = vpow.pop %v646
    %v648 = vadd.f32 %v647, 1.0
    %v649 = vrcp.pop %v648
    %v650 = vmul.f32 1.0, %v649
    %v651 = vadd.f32 %v642, %v259
    %v652 = vmul.f32 %v650, %v651
    %v653 = vadd.f32 %v567, %v652
    %v654 = vtanh.pop %v653
    %v655 = vsub.f32 %v564, %v654
    %657 = vrot.lane.b32.xlu0 %v655, 64
    %v658 = vpop.permute.xlu0 %657
    %v660 = vmul.f32 %v650, %v658
    %662 = vrot.lane.b32.xlu0 %v660, 64
    %v663 = vpop.permute.xlu0 %662
    %v665 = vadd.f32 %v654, %v663
    %v666 = vsel %vm569, %v665, %v564
    %v667 = vsel %vm569, %v665, 0.0
    %v668 = vld [vmem:[#allocation2 + $0x40] sm:$0xff]
    %v669 = vld [vmem:[#allocation2 + $0x48] sm:$0xff]
    %v670 = vld [vmem:[%s1 + $0x20] sm:$0xff]
    %vm671 = vcmp.ne.f32.partialorder %v670, 0.0
    %v673 = vsel %vm222, %v666, 0
    %675 = vmatprep.subr.mxu0 %v239
    %676 = vmatpush1.msra.mxu0 %v238
    %677 = vmatprep.subr.mxu0 %v241
    %678 = vmatpush1.msra.mxu0 %v240
    %679 = vmatprep.subr.mxu0 %v243
    %680 = vmatpush1.msra.mxu0 %v242
    %681 = vmatprep.subr.mxu0 %v245
    %682 = vmatpush1.msra.mxu0 %v244
    %683 = vmatprep.subr.mxu0 %v247
    %684 = vmatpush1.msra.mxu0 %v246
    %685 = vmatprep.subr.mxu0 %v249
    %686 = vmatpush1.msra.mxu0 %v248
    %687 = vmatprep.subr.mxu0 %v251
    %688 = vmatpush1.msra.mxu0 %v250
    %689 = vmatprep.subr.mxu0 %v253
    %690 = vmatpush1.msra.mxu0 %v252
    %691 = vmatprep.subr.mxu0 0.0
    %692 = vmatpush1.msra.mxu0 0.0
    %693 = vmatprep.subr.mxu0 0.0
    %694 = vmatpush1.msra.mxu0 0.0
    %695 = vmatprep.subr.mxu0 0.0
    %696 = vmatpush1.msra.mxu0 0.0
    %697 = vmatprep.subr.mxu0 0.0
    %698 = vmatpush1.msra.mxu0 0.0
    %699 = vmatprep.subr.mxu0 0.0
    %700 = vmatpush1.msra.mxu0 0.0
    %701 = vmatprep.subr.mxu0 0.0
    %702 = vmatpush1.msra.mxu0 0.0
    %703 = vmatprep.subr.mxu0 0.0
    %704 = vmatpush1.msra.mxu0 0.0
    %705 = vmatprep.subr.mxu0 0.0
    %706 = vmatpush1.msra.mxu0 0.0
    %707 = vmatprep.subr.mxu0 0.0
    %708 = vmatpush1.msra.mxu0 0.0
    %709 = vmatprep.subr.mxu0 0.0
    %710 = vmatpush1.msra.mxu0 0.0
    %711 = vmatprep.subr.mxu0 0.0
    %712 = vmatpush1.msra.mxu0 0.0
    %713 = vmatprep.subr.mxu0 0.0
    %714 = vmatpush1.msra.mxu0 0.0
    %715 = vmatprep.subr.mxu0 0.0
    %716 = vmatpush1.msra.mxu0 0.0
    %717 = vmatprep.subr.mxu0 0.0
    %718 = vmatpush1.msra.mxu0 0.0
    %719 = vmatprep.subr.mxu0 0.0
    %720 = vmatpush1.msra.mxu0 0.0
    %721 = vmatprep.subr.mxu0 0.0
    %722 = vmatpush1.msra.mxu0 0.0
    %723 = vmatprep.subr.mxu0 0.0
    %724 = vmatpush1.msra.mxu0 0.0
    %725 = vmatprep.subr.mxu0 0.0
    %726 = vmatpush1.msra.mxu0 0.0
    %727 = vmatprep.subr.mxu0 0.0
    %728 = vmatpush1.msra.mxu0 0.0
    %729 = vmatprep.subr.mxu0 0.0
    %730 = vmatpush1.msra.mxu0 0.0
    %731 = vmatprep.subr.mxu0 0.0
    %732 = vmatpush1.msra.mxu0 0.0
    %733 = vmatprep.subr.mxu0 0.0
    %734 = vmatpush1.msra.mxu0 0.0
    %735 = vmatprep.subr.mxu0 0.0
    %736 = vmatpush1.msra.mxu0 0.0
    %737 = vmatprep.subr.mxu0 0.0
    %738 = vmatpush1.msra.mxu0 0.0
    %739 = vmatprep.mubr.f32.mxu0 0.0
    %740 = vmatmul.mubr.f32.gmra.mrb[0].mxu0 %v673
    %v741 = vpop.f32.mrb[0].mxu0
    %v742 = vadd.f32 0.0, %v741
    %v743 = vpop.f32.mrb[0].mxu0
    %v744 = vadd.f32 0.0, %v743
    %745 = vdwg.mxu0
    %v746 = vadd.f32 %v668, %v742
    %v747 = vxor.u32 %v746, 2147483648
    %v748 = vmul.f32 %v747, 1.442695
    %v749 = vpow.pop %v748
    %v750 = vadd.f32 %v749, 1.0
    %v751 = vrcp.pop %v750
    %v752 = vmul.f32 1.0, %v751
    %v753 = vadd.f32 %v744, %v259
    %v754 = vmul.f32 %v752, %v753
    %v755 = vadd.f32 %v669, %v754
    %v756 = vtanh.pop %v755
    %v757 = vsub.f32 %v666, %v756
    %759 = vrot.lane.b32.xlu0 %v757, 64
    %v760 = vpop.permute.xlu0 %759
    %v762 = vmul.f32 %v752, %v760
    %764 = vrot.lane.b32.xlu0 %v762, 64
    %v765 = vpop.permute.xlu0 %764
    %v767 = vadd.f32 %v756, %v765
    %v768 = vsel %vm671, %v767, %v666
    %v769 = vsel %vm671, %v767, 0.0
    %v770 = vld [vmem:[#allocation2 + $0x50] sm:$0xff]
    %v771 = vld [vmem:[#allocation2 + $0x58] sm:$0xff]
    %v772 = vld [vmem:[%s1 + $0x28] sm:$0xff]
    %vm773 = vcmp.ne.f32.partialorder %v772, 0.0
    %v775 = vsel %vm222, %v768, 0
    %777 = vmatprep.subr.mxu0 %v239
    %778 = vmatpush1.msra.mxu0 %v238
    %779 = vmatprep.subr.mxu0 %v241
    %780 = vmatpush1.msra.mxu0 %v240
    %781 = vmatprep.subr.mxu0 %v243
    %782 = vmatpush1.msra.mxu0 %v242
    %783 = vmatprep.subr.mxu0 %v245
    %784 = vmatpush1.msra.mxu0 %v244
    %785 = vmatprep.subr.mxu0 %v247
    %786 = vmatpush1.msra.mxu0 %v246
    %787 = vmatprep.subr.mxu0 %v249
    %788 = vmatpush1.msra.mxu0 %v248
    %789 = vmatprep.subr.mxu0 %v251
    %790 = vmatpush1.msra.mxu0 %v250
    %791 = vmatprep.subr.mxu0 %v253
    %792 = vmatpush1.msra.mxu0 %v252
    %793 = vmatprep.subr.mxu0 0.0
    %794 = vmatpush1.msra.mxu0 0.0
    %795 = vmatprep.subr.mxu0 0.0
    %796 = vmatpush1.msra.mxu0 0.0
    %797 = vmatprep.subr.mxu0 0.0
    %798 = vmatpush1.msra.mxu0 0.0
    %799 = vmatprep.subr.mxu0 0.0
    %800 = vmatpush1.msra.mxu0 0.0
    %801 = vmatprep.subr.mxu0 0.0
    %802 = vmatpush1.msra.mxu0 0.0
    %803 = vmatprep.subr.mxu0 0.0
    %804 = vmatpush1.msra.mxu0 0.0
    %805 = vmatprep.subr.mxu0 0.0
    %806 = vmatpush1.msra.mxu0 0.0
    %807 = vmatprep.subr.mxu0 0.0
    %808 = vmatpush1.msra.mxu0 0.0
    %809 = vmatprep.subr.mxu0 0.0
    %810 = vmatpush1.msra.mxu0 0.0
    %811 = vmatprep.subr.mxu0 0.0
    %812 = vmatpush1.msra.mxu0 0.0
    %813 = vmatprep.subr.mxu0 0.0
    %814 = vmatpush1.msra.mxu0 0.0
    %815 = vmatprep.subr.mxu0 0.0
    %816 = vmatpush1.msra.mxu0 0.0
    %817 = vmatprep.subr.mxu0 0.0
    %818 = vmatpush1.msra.mxu0 0.0
    %819 = vmatprep.subr.mxu0 0.0
    %820 = vmatpush1.msra.mxu0 0.0
    %821 = vmatprep.subr.mxu0 0.0
    %822 = vmatpush1.msra.mxu0 0.0
    %823 = vmatprep.subr.mxu0 0.0
    %824 = vmatpush1.msra.mxu0 0.0
    %825 = vmatprep.subr.mxu0 0.0
    %826 = vmatpush1.msra.mxu0 0.0
    %827 = vmatprep.subr.mxu0 0.0
    %828 = vmatpush1.msra.mxu0 0.0
    %829 = vmatprep.subr.mxu0 0.0
    %830 = vmatpush1.msra.mxu0 0.0
    %831 = vmatprep.subr.mxu0 0.0
    %832 = vmatpush1.msra.mxu0 0.0
    %833 = vmatprep.subr.mxu0 0.0
    %834 = vmatpush1.msra.mxu0 0.0
    %835 = vmatprep.subr.mxu0 0.0
    %836 = vmatpush1.msra.mxu0 0.0
    %837 = vmatprep.subr.mxu0 0.0
    %838 = vmatpush1.msra.mxu0 0.0
    %839 = vmatprep.subr.mxu0 0.0
    %840 = vmatpush1.msra.mxu0 0.0
    %841 = vmatprep.mubr.f32.mxu0 0.0
    %842 = vmatmul.mubr.f32.gmra.mrb[0].mxu0 %v775
    %v843 = vpop.f32.mrb[0].mxu0
    %v844 = vadd.f32 0.0, %v843
    %v845 = vpop.f32.mrb[0].mxu0
    %v846 = vadd.f32 0.0, %v845
    %847 = vdwg.mxu0
    %v848 = vadd.f32 %v770, %v844
    %v849 = vxor.u32 %v848, 2147483648
    %v850 = vmul.f32 %v849, 1.442695
    %v851 = vpow.pop %v850
    %v852 = vadd.f32 %v851, 1.0
    %v853 = vrcp.pop %v852
    %v854 = vmul.f32 1.0, %v853
    %v855 = vadd.f32 %v846, %v259
    %v856 = vmul.f32 %v854, %v855
    %v857 = vadd.f32 %v771, %v856
    %v858 = vtanh.pop %v857
    %v859 = vsub.f32 %v768, %v858
    %861 = vrot.lane.b32.xlu0 %v859, 64
    %v862 = vpop.permute.xlu0 %861
    %v864 = vmul.f32 %v854, %v862
    %866 = vrot.lane.b32.xlu0 %v864, 64
    %v867 = vpop.permute.xlu0 %866
    %v869 = vadd.f32 %v858, %v867
    %v870 = vsel %vm773, %v869, %v768
    %v871 = vsel %vm773, %v869, 0.0
    %v872 = vld [vmem:[#allocation2 + $0x60] sm:$0xff]
    %v873 = vld [vmem:[#allocation2 + $0x68] sm:$0xff]
    %v874 = vld [vmem:[%s1 + $0x30] sm:$0xff]
    %vm875 = vcmp.ne.f32.partialorder %v874, 0.0
    %v877 = vsel %vm222, %v870, 0
    %879 = vmatprep.subr.mxu0 %v239
    %880 = vmatpush1.msra.mxu0 %v238
    %881 = vmatprep.subr.mxu0 %v241
    %882 = vmatpush1.msra.mxu0 %v240
    %883 = vmatprep.subr.mxu0 %v243
    %884 = vmatpush1.msra.mxu0 %v242
    %885 = vmatprep.subr.mxu0 %v245
    %886 = vmatpush1.msra.mxu0 %v244
    %887 = vmatprep.subr.mxu0 %v247
    %888 = vmatpush1.msra.mxu0 %v246
    %889 = vmatprep.subr.mxu0 %v249
    %890 = vmatpush1.msra.mxu0 %v248
    %891 = vmatprep.subr.mxu0 %v251
    %892 = vmatpush1.msra.mxu0 %v250
    %893 = vmatprep.subr.mxu0 %v253
    %894 = vmatpush1.msra.mxu0 %v252
    %895 = vmatprep.subr.mxu0 0.0
    %896 = vmatpush1.msra.mxu0 0.0
    %897 = vmatprep.subr.mxu0 0.0
    %898 = vmatpush1.msra.mxu0 0.0
    %899 = vmatprep.subr.mxu0 0.0
    %900 = vmatpush1.msra.mxu0 0.0
    %901 = vmatprep.subr.mxu0 0.0
    %902 = vmatpush1.msra.mxu0 0.0
    %903 = vmatprep.subr.mxu0 0.0
    %904 = vmatpush1.msra.mxu0 0.0
    %905 = vmatprep.subr.mxu0 0.0
    %906 = vmatpush1.msra.mxu0 0.0
    %907 = vmatprep.subr.mxu0 0.0
    %908 = vmatpush1.msra.mxu0 0.0
    %909 = vmatprep.subr.mxu0 0.0
    %910 = vmatpush1.msra.mxu0 0.0
    %911 = vmatprep.subr.mxu0 0.0
    %912 = vmatpush1.msra.mxu0 0.0
    %913 = vmatprep.subr.mxu0 0.0
    %914 = vmatpush1.msra.mxu0 0.0
    %915 = vmatprep.subr.mxu0 0.0
    %916 = vmatpush1.msra.mxu0 0.0
    %917 = vmatprep.subr.mxu0 0.0
    %918 = vmatpush1.msra.mxu0 0.0
    %919 = vmatprep.subr.mxu0 0.0
    %920 = vmatpush1.msra.mxu0 0.0
    %921 = vmatprep.subr.mxu0 0.0
    %922 = vmatpush1.msra.mxu0 0.0
    %923 = vmatprep.subr.mxu0 0.0
    %924 = vmatpush1.msra.mxu0 0.0
    %925 = vmatprep.subr.mxu0 0.0
    %926 = vmatpush1.msra.mxu0 0.0
    %927 = vmatprep.subr.mxu0 0.0
    %928 = vmatpush1.msra.mxu0 0.0
    %929 = vmatprep.subr.mxu0 0.0
    %930 = vmatpush1.msra.mxu0 0.0
    %931 = vmatprep.subr.mxu0 0.0
    %932 = vmatpush1.msra.mxu0 0.0
    %933 = vmatprep.subr.mxu0 0.0
    %934 = vmatpush1.msra.mxu0 0.0
    %935 = vmatprep.subr.mxu0 0.0
    %936 = vmatpush1.msra.mxu0 0.0
    %937 = vmatprep.subr.mxu0 0.0
    %938 = vmatpush1.msra.mxu0 0.0
    %939 = vmatprep.subr.mxu0 0.0
    %940 = vmatpush1.msra.mxu0 0.0
    %941 = vmatprep.subr.mxu0 0.0
    %942 = vmatpush1.msra.mxu0 0.0
    %943 = vmatprep.mubr.f32.mxu0 0.0
    %944 = vmatmul.mubr.f32.gmra.mrb[0].mxu0 %v877
    %v945 = vpop.f32.mrb[0].mxu0
    %v946 = vadd.f32 0.0, %v945
    %v947 = vpop.f32.mrb[0].mxu0
    %v948 = vadd.f32 0.0, %v947
    %949 = vdwg.mxu0
    %v950 = vadd.f32 %v872, %v946
    %v951 = vxor.u32 %v950, 2147483648
    %v952 = vmul.f32 %v951, 1.442695
    %v953 = vpow.pop %v952
    %v954 = vadd.f32 %v953, 1.0
    %v955 = vrcp.pop %v954
    %v956 = vmul.f32 1.0, %v955
    %v957 = vadd.f32 %v948, %v259
    %v958 = vmul.f32 %v956, %v957
    %v959 = vadd.f32 %v873, %v958
    %v960 = vtanh.pop %v959
    %v961 = vsub.f32 %v870, %v960
    %963 = vrot.lane.b32.xlu0 %v961, 64
    %v964 = vpop.permute.xlu0 %963
    %v966 = vmul.f32 %v956, %v964
    %968 = vrot.lane.b32.xlu0 %v966, 64
    %v969 = vpop.permute.xlu0 %968
    %v971 = vadd.f32 %v960, %v969
    %v972 = vsel %vm875, %v971, %v870
    %v973 = vsel %vm875, %v971, 0.0
    %v974 = vld [vmem:[#allocation2 + $0x70] sm:$0xff]
    %v975 = vld [vmem:[#allocation2 + $0x78] sm:$0xff]
    %v976 = vld [vmem:[%s1 + $0x38] sm:$0xff]
    %vm977 = vcmp.ne.f32.partialorder %v976, 0.0
    %v979 = vsel %vm222, %v972, 0
    %981 = vmatprep.subr.mxu0 %v239
    %982 = vmatpush1.msra.mxu0 %v238
    %983 = vmatprep.subr.mxu0 %v241
    %984 = vmatpush1.msra.mxu0 %v240
    %985 = vmatprep.subr.mxu0 %v243
    %986 = vmatpush1.msra.mxu0 %v242
    %987 = vmatprep.subr.mxu0 %v245
    %988 = vmatpush1.msra.mxu0 %v244
    %989 = vmatprep.subr.mxu0 %v247
    %990 = vmatpush1.msra.mxu0 %v246
    %991 = vmatprep.subr.mxu0 %v249
    %992 = vmatpush1.msra.mxu0 %v248
    %993 = vmatprep.subr.mxu0 %v251
    %994 = vmatpush1.msra.mxu0 %v250
    %995 = vmatprep.subr.mxu0 %v253
    %996 = vmatpush1.msra.mxu0 %v252
    %997 = vmatprep.subr.mxu0 0.0
    %998 = vmatpush1.msra.mxu0 0.0
    %999 = vmatprep.subr.mxu0 0.0
    %1000 = vmatpush1.msra.mxu0 0.0
    %1001 = vmatprep.subr.mxu0 0.0
    %1002 = vmatpush1.msra.mxu0 0.0
    %1003 = vmatprep.subr.mxu0 0.0
    %1004 = vmatpush1.msra.mxu0 0.0
    %1005 = vmatprep.subr.mxu0 0.0
    %1006 = vmatpush1.msra.mxu0 0.0
    %1007 = vmatprep.subr.mxu0 0.0
    %1008 = vmatpush1.msra.mxu0 0.0
    %1009 = vmatprep.subr.mxu0 0.0
    %1010 = vmatpush1.msra.mxu0 0.0
    %1011 = vmatprep.subr.mxu0 0.0
    %1012 = vmatpush1.msra.mxu0 0.0
    %1013 = vmatprep.subr.mxu0 0.0
    %1014 = vmatpush1.msra.mxu0 0.0
    %1015 = vmatprep.subr.mxu0 0.0
    %1016 = vmatpush1.msra.mxu0 0.0
    %1017 = vmatprep.subr.mxu0 0.0
    %1018 = vmatpush1.msra.mxu0 0.0
    %1019 = vmatprep.subr.mxu0 0.0
    %1020 = vmatpush1.msra.mxu0 0.0
    %1021 = vmatprep.subr.mxu0 0.0
    %1022 = vmatpush1.msra.mxu0 0.0
    %1023 = vmatprep.subr.mxu0 0.0
    %1024 = vmatpush1.msra.mxu0 0.0
    %1025 = vmatprep.subr.mxu0 0.0
    %1026 = vmatpush1.msra.mxu0 0.0
    %1027 = vmatprep.subr.mxu0 0.0
    %1028 = vmatpush1.msra.mxu0 0.0
    %1029 = vmatprep.subr.mxu0 0.0
    %1030 = vmatpush1.msra.mxu0 0.0
    %1031 = vmatprep.subr.mxu0 0.0
    %1032 = vmatpush1.msra.mxu0 0.0
    %1033 = vmatprep.subr.mxu0 0.0
    %1034 = vmatpush1.msra.mxu0 0.0
    %1035 = vmatprep.subr.mxu0 0.0
    %1036 = vmatpush1.msra.mxu0 0.0
    %1037 = vmatprep.subr.mxu0 0.0
    %1038 = vmatpush1.msra.mxu0 0.0
    %1039 = vmatprep.subr.mxu0 0.0
    %1040 = vmatpush1.msra.mxu0 0.0
    %1041 = vmatprep.subr.mxu0 0.0
    %1042 = vmatpush1.msra.mxu0 0.0
    %1043 = vmatprep.subr.mxu0 0.0
    %1044 = vmatpush1.msra.mxu0 0.0
    %1045 = vmatprep.mubr.f32.mxu0 0.0
    %1046 = vmatmul.mubr.f32.gmra.mrb[0].mxu0 %v979
    %v1047 = vpop.f32.mrb[0].mxu0
    %v1048 = vadd.f32 0.0, %v1047
    %v1049 = vpop.f32.mrb[0].mxu0
    %v1050 = vadd.f32 0.0, %v1049
    %1051 = vdwg.mxu0
    %v1052 = vadd.f32 %v974, %v1048
    %v1053 = vxor.u32 %v1052, 2147483648
    %v1054 = vmul.f32 %v1053, 1.442695
    %v1055 = vpow.pop %v1054
    %v1056 = vadd.f32 %v1055, 1.0
    %v1057 = vrcp.pop %v1056
    %v1058 = vmul.f32 1.0, %v1057
    %v1059 = vadd.f32 %v1050, %v259
    %v1060 = vmul.f32 %v1058, %v1059
    %v1061 = vadd.f32 %v975, %v1060
    %v1062 = vtanh.pop %v1061
    %v1063 = vsub.f32 %v972, %v1062
    %1065 = vrot.lane.b32.xlu0 %v1063, 64
    %v1066 = vpop.permute.xlu0 %1065
    %v1068 = vmul.f32 %v1058, %v1066
    %1070 = vrot.lane.b32.xlu0 %v1068, 64
    %v1071 = vpop.permute.xlu0 %1070
    %v1073 = vadd.f32 %v1062, %v1071
    %v1074 = vsel %vm977, %v1073, %v972
    %v1075 = vsel %vm977, %v1073, 0.0
    %1076 = vst.msk [vmem:[#allocation8] sm:$0xff] %vm222, %v361
    %1077 = vst.msk [vmem:[#allocation8 + $0x8] sm:$0xff] %vm222, %v463
    %1078 = vst.msk [vmem:[#allocation8 + $0x10] sm:$0xff] %vm222, %v565
    %1079 = vst.msk [vmem:[#allocation8 + $0x18] sm:$0xff] %vm222, %v667
    %1080 = vst.msk [vmem:[#allocation8 + $0x20] sm:$0xff] %vm222, %v769
    %1081 = vst.msk [vmem:[#allocation8 + $0x28] sm:$0xff] %vm222, %v871
    %1082 = vst.msk [vmem:[#allocation8 + $0x30] sm:$0xff] %vm222, %v973
    %1083 = vst.msk [vmem:[#allocation8 + $0x38] sm:$0xff] %vm222, %v1075
    %1084 = vst.msk [vmem:[#allocation9] sm:$0xff] %vm222, %v1074
    // Predicated region
    $region34: #{tpu_custom_call.1} parent=1 // pred_check
      _
    $region35: #{tpu_custom_call.1} parent=1 // pred_check_branch
      %1086 = sbr.rel (0) target = $region37
    $region36: #{tpu_custom_call.1} parent=1 // pred_region
      %s1088 = ssub.s32 1024, 1024
      %1089 = vsyncadd [#allocation5], %s1088
      %s1090 = sshll.u32 [#allocation8], 4
      %s1091 = int_to_ptr.vmem [resolvable:$true] %s1090
      %1096 = dma.vmem_to_hbm [thread:$0]  %s1091, 1024, %s6, [#allocation5], 128, 128, 8
    $region37: #{tpu_custom_call.1} parent=1 // pred_fallthru
      _
    // Predicated region
    $region38: #{tpu_custom_call.1} parent=1 // pred_check
      _
    $region39: #{tpu_custom_call.1} parent=1 // pred_check_branch
      %1098 = sbr.rel (0) target = $region41
    $region40: #{tpu_custom_call.1} parent=1 // pred_region
      %s1100 = ssub.s32 128, 128
      %1101 = vsyncadd [#allocation10], %s1100
      %s1103 = sshll.u32 [#allocation9], 4
      %s1104 = int_to_ptr.vmem [resolvable:$true] %s1103
      %1106 = dma.vmem_to_hbm [thread:$0]  %s1104, 128, %s7, [#allocation10]
    $region41: #{tpu_custom_call.1} parent=1 // pred_fallthru
      _
    // Predicated region
    $region42: #{tpu_custom_call.1} parent=1 // pred_check
      _
    $region43: #{tpu_custom_call.1} parent=1 // pred_check_branch
      %1108 = sbr.rel (0) target = $region45
    $region44: #{tpu_custom_call.1} parent=1 // pred_region
      %1109 = dma.done [#allocation5], 1024
    $region45: #{tpu_custom_call.1} parent=1 // pred_fallthru
      _
    // Predicated region
    $region46: #{tpu_custom_call.1} parent=1 // pred_check
      _
    $region47: #{tpu_custom_call.1} parent=1 // pred_check_branch
      %1111 = sbr.rel (0) target = $region49
    $region48: #{tpu_custom_call.1} parent=1 // pred_region
      %1112 = dma.done [#allocation10], 128
    $region49: #{tpu_custom_call.1} parent=1 // pred_fallthru
      _
    %1113 = vsyncpa [#allocation4], 1
    %1114 = vsyncpa [#allocation7], 1
    %1115 = vsyncpa [#allocation5], 1
    %1116 = vsyncpa [#allocation10], 1

</llo_original>
